<compile_context>
chip_gen: v5e
topology: v5e:2x2
jax: 0.10.0
libtpu: 0.0.40
codegen_flags: <defaults>
</compile_context>

<pallas_src>
import functools

import jax
import jax.numpy as jnp
from jax import lax
from jax.experimental import pallas as pl
from jax.experimental.pallas import tpu as pltpu


def _round_up(x, m):
    return ((x + m - 1) // m) * m


def _stack_time8(hs, tile_b, width):
    """Assemble 8 (tile_b, width) register values into (tile_b, 8, width).

    Broadcast + select (pure VPU work, off the serial Euler dependence chain)
    is used instead of lax.concatenate so the grouped trajectory store never
    relies on sublane-concatenate lowering.
    """
    step = lax.broadcasted_iota(jnp.int32, (1, 8, 1), 1)
    blk = jnp.broadcast_to(hs[0][:, None, :], (tile_b, 8, width))
    for k in range(1, 8):
        blk = jnp.where(step == k, hs[k][:, None, :], blk)
    return blk


def _decoder_kernel(h0_ref, zw1z_ref, w1h_ref, w2dt_ref, b2dt_ref, wo_ref,
                    sol_ref, ms_ref,
                    h_ref, traj_ref,
                    *, state, obs):
    # Grid is (batch_tiles, time_chunks).  The time axis MUST stay the inner
    # ("arbitrary") grid dimension: the fused Euler state is carried across
    # time chunks in h_ref and (re)initialised only at tc == 0.
    tc = pl.program_id(1)

    tile_b, t_blk, two_s = traj_ref.shape

    @pl.when(tc == 0)
    def _init():
        h_ref[...] = h0_ref[...]          # h0 = z @ [W0m | W0s] (wrapper)

    # Loop invariants.  zw1z = z @ [W1zm|W1zs] + [b1m|b1s] is precomputed in
    # the wrapper; the dt*b2 broadcast is hoisted out of the step loop.
    w1h = w1h_ref[...]                     # (2S, 2H), block-diagonal
    w2dt = w2dt_ref[...]                   # (2H, 2S), block-diagonal, * dt
    cdt = w1h.dtype                        # f32, or bf16 on v6e/v7x
    zw1z = zw1z_ref[...]                   # (tile_b, 2H) f32
    dtb2 = jnp.broadcast_to(b2dt_ref[...], (tile_b, two_s))

    n_grp = t_blk // 8

    def euler_group(g, h):
        # 8 unrolled Euler steps; state stays in registers (f32), the
        # trajectory record goes to scratch with one aligned grouped store.
        hs = []
        for _ in range(8):
            hs.append(h)
            hid = jnp.tanh(
                jnp.dot(h.astype(cdt), w1h, preferred_element_type=jnp.float32)
                + zw1z)
            h = (h
                 + jnp.dot(hid.astype(cdt), w2dt,
                           preferred_element_type=jnp.float32)
                 + dtb2)
        row = pl.multiple_of(g * 8, 8)
        traj_ref[:, pl.ds(row, 8), :] = _stack_time8(hs, tile_b, two_s)
        return h

    h = lax.fori_loop(0, n_grp, euler_group, h_ref[...])
    h_ref[...] = h                         # carry to the next time chunk

    # ---------------- chunk writeback (off the serial chain) ----------------
    traj = traj_ref[...]                   # (tile_b, t_blk, 2S), batch-major
    sol_ref[...] = traj[:, :, :state]      # solution = mean-ODE half

    # One flat MXU matmul (M = tile_b * t_blk) for both output projections:
    # block-diagonal Wo gives [mean | std] in a single pass.
    proj = jnp.dot(traj.reshape(tile_b * t_blk, two_s).astype(cdt),
                   wo_ref[...], preferred_element_type=jnp.float32)
    proj3 = proj.reshape(tile_b, t_blk, 2 * obs)

    # Lane-dense fused [mean | std] output: time on lanes.  Per-batch-row 2-D
    # transposes (XLU, idle here) keep the relayout on well-supported ops.
    for b in range(tile_b):
        ms_ref[b, :, :] = proj3[b].T       # (2*obs, t_blk)


def variance_gaussian_decoder(z, params, *, num_times, dt,
                              tile_b_target=128, t_blk_target=128,
                              compute_dtype=jnp.float32):
    """Pallas-backed forward: returns (solution, mean, std)."""
    batch, latent = z.shape
    state = params["w0m"].shape[1]
    hidden = params["w1hm"].shape[1]
    obs = params["wom"].shape[1]
    f32 = jnp.float32

    # --- Fuse the two ODEs into one block-diagonal system (done once). ---
    zsh = jnp.zeros((state, hidden), f32)
    zhs = jnp.zeros((hidden, state), f32)
    zso = jnp.zeros((state, obs), f32)
    w0f = jnp.concatenate([params["w0m"], params["w0s"]], axis=1)          # (L, 2S)
    w1hf = jnp.block([[params["w1hm"], zsh], [zsh, params["w1hs"]]])       # (2S, 2H)
    w1zf = jnp.concatenate([params["w1zm"], params["w1zs"]], axis=1)       # (L, 2H)
    b1f = jnp.concatenate([params["b1m"], params["b1s"]], axis=1)          # (1, 2H)
    w2dtf = jnp.block([[params["w2m"], zhs], [zhs, params["w2s"]]]) * dt   # (2H, 2S)
    b2dtf = jnp.concatenate([params["b2m"], params["b2s"]], axis=1) * dt   # (1, 2S)
    wof = jnp.block([[params["wom"], zso], [zso, params["wos"]]])          # (2S, 2O)

    # --- Batch tiling: big MXU M, but keep >=2 tiles for v7x dual-TC. ---
    b8 = _round_up(batch, 8)
    tile_b = min(tile_b_target, b8)
    if b8 >= 16 and b8 // tile_b < 2:
        tile_b = _round_up(pl.cdiv(b8, 2), 8)
    b_pad = _round_up(b8, tile_b)

    # --- Time chunking: lane-dense mean/std needs t_blk % 128 == 0 or a
    #     single chunk covering the whole (8-padded) time axis. ---
    t8 = _round_up(num_times, 8)
    if t8 <= t_blk_target:
        t_blk = t8
        t_pad = t8
    else:
        t_blk = _round_up(t_blk_target, 128)
        t_pad = _round_up(num_times, t_blk)

    if b_pad != batch:
        z = jnp.pad(z, ((0, b_pad - batch), (0, 0)))

    # z-dependent terms hoisted out of the kernel entirely (tiny XLA matmuls).
    h0 = (z @ w0f).astype(f32)             # (b_pad, 2S)
    zw1z = (z @ w1zf + b1f).astype(f32)    # (b_pad, 2H)

    # Optional bf16 matmul inputs for v6e/v7x (state / drives stay f32).
    w1hf = w1hf.astype(compute_dtype)
    w2dtf = w2dtf.astype(compute_dtype)
    wof = wof.astype(compute_dtype)

    grid = (b_pad // tile_b, t_pad // t_blk)

    kernel = functools.partial(_decoder_kernel, state=state, obs=obs)

    in_specs = [
        pl.BlockSpec((tile_b, 2 * state), lambda b, t: (b, 0)),      # h0
        pl.BlockSpec((tile_b, 2 * hidden), lambda b, t: (b, 0)),     # zw1z
        pl.BlockSpec((2 * state, 2 * hidden), lambda b, t: (0, 0)),  # w1h
        pl.BlockSpec((2 * hidden, 2 * state), lambda b, t: (0, 0)),  # w2*dt
        pl.BlockSpec((1, 2 * state), lambda b, t: (0, 0)),           # b2*dt
        pl.BlockSpec((2 * state, 2 * obs), lambda b, t: (0, 0)),     # wo
    ]
    out_specs = (
        pl.BlockSpec((tile_b, t_blk, state), lambda b, t: (b, t, 0)),    # sol
        pl.BlockSpec((tile_b, 2 * obs, t_blk), lambda b, t: (b, 0, t)),  # [mean|std]
    )
    out_shape = (
        jax.ShapeDtypeStruct((b_pad, t_pad, state), f32),
        jax.ShapeDtypeStruct((b_pad, 2 * obs, t_pad), f32),
    )
    scratch_shapes = [
        pltpu.VMEM((tile_b, 2 * state), f32),            # fused ODE state carry
        pltpu.VMEM((tile_b, t_blk, 2 * state), f32),     # per-chunk trajectory
    ]

    # VMEM budget for the enlarged tiles (double-buffered IO + scratch),
    # with headroom; v7x has only 64 MiB physical VMEM.
    vmem_bytes = 4 * (
        tile_b * t_blk * 2 * state                      # traj scratch
        + tile_b * 2 * state                            # carried state
        + 2 * tile_b * t_blk * state                    # sol (double buffered)
        + 2 * tile_b * 2 * obs * t_blk                  # mean|std (double buffered)
        + 2 * tile_b * (2 * state + 2 * hidden)         # h0 / zw1z
        + 2 * (2 * (2 * state) * (2 * hidden) + 2 * state
               + (2 * state) * (2 * obs)))              # weights
    vmem_limit = int(min(48 << 20, max(2 * vmem_bytes, 16 << 20)))

    # Advisory cost hint so XLA schedules around the long serial kernel.
    flops = int(b_pad * t_pad * (4 * (2 * state) * (2 * hidden)
                                 + 2 * (2 * state) * (2 * obs)))
    transcendentals = int(b_pad * t_pad * 2 * hidden)
    bytes_accessed = int(4 * (
        b_pad * t_pad * (state + 2 * obs)
        + b_pad * (2 * state + 2 * hidden)
        + 2 * (2 * state) * (2 * hidden) + 2 * state + (2 * state) * (2 * obs)))

    sol, ms = pl.pallas_call(
        kernel,
        out_shape=out_shape,
        grid_spec=pltpu.PrefetchScalarGridSpec(
            num_scalar_prefetch=0,
            grid=grid,
            in_specs=in_specs,
            out_specs=out_specs,
            scratch_shapes=scratch_shapes,
        ),
        compiler_params=pltpu.CompilerParams(
            dimension_semantics=("parallel", "arbitrary"),
            vmem_limit_bytes=vmem_limit),
        cost_estimate=pl.CostEstimate(flops=flops,
                                      transcendentals=transcendentals,
                                      bytes_accessed=bytes_accessed),
    )(h0, zw1z, w1hf, w2dtf, b2dtf, wof)

    # Glue: slice off padding; mean/std are already (B, obs, T) lane-dense,
    # matching torch's .squeeze().permute(0, 2, 1) - no wrapper transpose.
    sol = sol[:batch, :num_times, :]
    mean = ms[:batch, :obs, :num_times]
    std = ms[:batch, obs:, :num_times]
    return sol, mean, std


def init_params(key, *, latent, state, hidden, obs, num_times, constant_std=0.1):
    ks = jax.random.split(key, 12)

    def lin(k, fan_in, shape):
        return jax.random.normal(k, shape, jnp.float32) / jnp.sqrt(fan_in)

    params = {
        # "mean" OdeModel
        "w0m": lin(ks[0], latent, (latent, state)),
        "w1hm": lin(ks[1], state + latent, (state, hidden)),
        "w1zm": lin(ks[2], state + latent, (latent, hidden)),
        "b1m": jnp.zeros((1, hidden), jnp.float32),
        "w2m": lin(ks[3], hidden, (hidden, state)),
        "b2m": jnp.zeros((1, state), jnp.float32),
        # "std" OdeModel
        "w0s": lin(ks[4], latent, (latent, state)),
        "w1hs": lin(ks[5], state + latent, (state, hidden)),
        "w1zs": lin(ks[6], state + latent, (latent, hidden)),
        "b1s": jnp.zeros((1, hidden), jnp.float32),
        "w2s": lin(ks[7], hidden, (hidden, state)),
        "b2s": jnp.zeros((1, state), jnp.float32),
        # output_mean / output_std: Linear(state -> obs, bias=False), stored
        # pre-transposed as (state, obs) so the kernel does h @ W.
        "wom": lin(ks[8], state, (state, obs)),
        "wos": lin(ks[9], state, (state, obs)),
        # constant_std parameter exists in the module but is unused in forward.
        "constant_std": jnp.ones((obs, num_times), jnp.float32) * constant_std,
    }
    return params


def reference(z, p, *, num_times, dt):
    """Pure-JAX reference of the same forward, for verification."""
    hm = z @ p["w0m"]
    hs = z @ p["w0s"]
    sols, means, stds = [], [], []
    for _ in range(num_times):
        sols.append(hm)
        means.append(hm @ p["wom"])
        stds.append(hs @ p["wos"])
        hm = hm + dt * (jnp.tanh(hm @ p["w1hm"] + z @ p["w1zm"] + p["b1m"])
                        @ p["w2m"] + p["b2m"])
        hs = hs + dt * (jnp.tanh(hs @ p["w1hs"] + z @ p["w1zs"] + p["b1s"])
                        @ p["w2s"] + p["b2s"])
    sol = jnp.stack(sols, axis=1)
    mean = jnp.transpose(jnp.stack(means, axis=1), (0, 2, 1))
    std = jnp.transpose(jnp.stack(stds, axis=1), (0, 2, 1))
    return sol, mean, std


if __name__ == "__main__":
    # Small, module-consistent shapes.
    BATCH, LATENT, STATE, HIDDEN, OBS, T = 8, 8, 16, 32, 4, 16
    times = jnp.linspace(0.0, 1.0, T)
    dt = float(times[1] - times[0])

    key = jax.random.PRNGKey(0)
    kz, kp = jax.random.split(key)
    z = jax.random.normal(kz, (BATCH, LATENT), jnp.float32)
    params = init_params(kp, latent=LATENT, state=STATE, hidden=HIDDEN,
                         obs=OBS, num_times=T)

    sol, mean, std = variance_gaussian_decoder(z, params, num_times=T, dt=dt)
    jax.block_until_ready((sol, mean, std))

    sol_r, mean_r, std_r = reference(z, params, num_times=T, dt=dt)
    assert sol.shape == (BATCH, T, STATE)
    assert mean.shape == (BATCH, OBS, T) and std.shape == (BATCH, OBS, T)
    assert jnp.allclose(sol, sol_r, rtol=1e-3, atol=1e-3)
    assert jnp.allclose(mean, mean_r, rtol=1e-3, atol=1e-3)
    assert jnp.allclose(std, std_r, rtol=1e-3, atol=1e-3)

    print("KERNEL_OK")
</pallas_src>

<mosaic_0001>
module attributes {stable_mosaic.version = 11 : i64} {
  func.func @_decoder_kernel(%arg0: i32, %arg1: i32, %arg2: memref<8x32xf32, #tpu.memory_space<vmem>>, %arg3: memref<8x64xf32, #tpu.memory_space<vmem>>, %arg4: memref<32x64xf32, #tpu.memory_space<vmem>>, %arg5: memref<64x32xf32, #tpu.memory_space<vmem>>, %arg6: memref<1x32xf32, #tpu.memory_space<vmem>>, %arg7: memref<32x8xf32, #tpu.memory_space<vmem>>, %arg8: memref<8x16x16xf32, #tpu.memory_space<vmem>>, %arg9: memref<8x8x16xf32, #tpu.memory_space<vmem>>, %arg10: memref<8x32xf32, #tpu.memory_space<vmem>>, %arg11: memref<8x16x32xf32, #tpu.memory_space<vmem>>) attributes {dimension_semantics = [#tpu.dimension_semantics<parallel>, #tpu.dimension_semantics<arbitrary>], iteration_bounds = array<i64: 1, 1>, scalar_prefetch = 0 : i64, scratch_operands = 2 : i64, tpu.core_type = #tpu.core_type<tc>, window_params = [{transform_indices = @transform_0, window_bounds = array<i64: 8, 32>}, {transform_indices = @transform_1, window_bounds = array<i64: 8, 64>}, {pipeline_mode = #tpu.pipeline_mode<synchronous>, transform_indices = @transform_2, window_bounds = array<i64: 32, 64>}, {pipeline_mode = #tpu.pipeline_mode<synchronous>, transform_indices = @transform_3, window_bounds = array<i64: 64, 32>}, {pipeline_mode = #tpu.pipeline_mode<synchronous>, transform_indices = @transform_4, window_bounds = array<i64: 1, 32>}, {pipeline_mode = #tpu.pipeline_mode<synchronous>, transform_indices = @transform_5, window_bounds = array<i64: 32, 8>}, {transform_indices = @transform_6, window_bounds = array<i64: 8, 16, 16>}, {transform_indices = @transform_7, window_bounds = array<i64: 8, 8, 16>}]} {
    %c0_i32 = arith.constant 0 : i32
    %0 = arith.cmpi eq, %arg1, %c0_i32 : i32
    %1 = arith.extui %0 : i1 to i32
    %c0_i32_0 = arith.constant 0 : i32
    %2 = arith.cmpi ne, %1, %c0_i32_0 : i32
    scf.if %2 {
      %c0_39 = arith.constant 0 : index
      %c0_40 = arith.constant 0 : index
      %68 = vector.load %arg2[%c0_39, %c0_40] : memref<8x32xf32, #tpu.memory_space<vmem>>, vector<8x32xf32>
      %c0_41 = arith.constant 0 : index
      %c0_42 = arith.constant 0 : index
      %69 = vector.load %arg10[%c0_41, %c0_42] : memref<8x32xf32, #tpu.memory_space<vmem>>, vector<8x32xf32>
      tpu.vector_store %arg10[%c0_41, %c0_42], %68 {strides = array<i32>} : memref<8x32xf32, #tpu.memory_space<vmem>>, vector<8x32xf32>,
    } else {
    }
    %c0 = arith.constant 0 : index
    %c0_1 = arith.constant 0 : index
    %3 = vector.load %arg4[%c0, %c0_1] : memref<32x64xf32, #tpu.memory_space<vmem>>, vector<32x64xf32>
    %c0_2 = arith.constant 0 : index
    %c0_3 = arith.constant 0 : index
    %4 = vector.load %arg5[%c0_2, %c0_3] : memref<64x32xf32, #tpu.memory_space<vmem>>, vector<64x32xf32>
    %c0_4 = arith.constant 0 : index
    %c0_5 = arith.constant 0 : index
    %5 = vector.load %arg3[%c0_4, %c0_5] : memref<8x64xf32, #tpu.memory_space<vmem>>, vector<8x64xf32>
    %c0_6 = arith.constant 0 : index
    %c0_7 = arith.constant 0 : index
    %6 = vector.load %arg6[%c0_6, %c0_7] : memref<1x32xf32, #tpu.memory_space<vmem>>, vector<1x32xf32>
    %7 = vector.shape_cast %6 : vector<1x32xf32> to vector<1x32xf32>
    %8 = vector.broadcast %7 : vector<1x32xf32> to vector<8x32xf32>
    %c0_8 = arith.constant 0 : index
    %c0_9 = arith.constant 0 : index
    %9 = vector.load %arg10[%c0_8, %c0_9] : memref<8x32xf32, #tpu.memory_space<vmem>>, vector<8x32xf32>
    %c0_i32_10 = arith.constant 0 : i32
    %c2_i32 = arith.constant 2 : i32
    %10 = arith.addi %c0_i32_10, %c2_i32 : i32
    %c1_i32 = arith.constant 1 : i32
    %11 = scf.for %arg12 = %c0_i32_10 to %10 step %c1_i32 iter_args(%arg13 = %9) -> (vector<8x32xf32>)  : i32 {
      %cst_39 = arith.constant dense<0.000000e+00> : vector<8x64xf32>
      %68 = tpu.matmul %arg13, %3, %cst_39 {dimension_numbers = #tpu.dot_dimension_numbers<[1], [0], [0], [1], [0, 0, 1, 1], [], []>} : vector<8x32xf32>, vector<32x64xf32>, vector<8x64xf32> -> vector<8x64xf32>
      %69 = arith.addf %68, %5 : vector<8x64xf32>
      %70 = math.tanh %69 : vector<8x64xf32>
      %cst_40 = arith.constant dense<0.000000e+00> : vector<8x32xf32>
      %71 = tpu.matmul %70, %4, %cst_40 {dimension_numbers = #tpu.dot_dimension_numbers<[1], [0], [0], [1], [0, 0, 1, 1], [], []>} : vector<8x64xf32>, vector<64x32xf32>, vector<8x32xf32> -> vector<8x32xf32>
      %72 = arith.addf %arg13, %71 : vector<8x32xf32>
      %73 = arith.addf %72, %8 : vector<8x32xf32>
      %cst_41 = arith.constant dense<0.000000e+00> : vector<8x64xf32>
      %74 = tpu.matmul %73, %3, %cst_41 {dimension_numbers = #tpu.dot_dimension_numbers<[1], [0], [0], [1], [0, 0, 1, 1], [], []>} : vector<8x32xf32>, vector<32x64xf32>, vector<8x64xf32> -> vector<8x64xf32>
      %75 = arith.addf %74, %5 : vector<8x64xf32>
      %76 = math.tanh %75 : vector<8x64xf32>
      %cst_42 = arith.constant dense<0.000000e+00> : vector<8x32xf32>
      %77 = tpu.matmul %76, %4, %cst_42 {dimension_numbers = #tpu.dot_dimension_numbers<[1], [0], [0], [1], [0, 0, 1, 1], [], []>} : vector<8x64xf32>, vector<64x32xf32>, vector<8x32xf32> -> vector<8x32xf32>
      %78 = arith.addf %73, %77 : vector<8x32xf32>
      %79 = arith.addf %78, %8 : vector<8x32xf32>
      %cst_43 = arith.constant dense<0.000000e+00> : vector<8x64xf32>
      %80 = tpu.matmul %79, %3, %cst_43 {dimension_numbers = #tpu.dot_dimension_numbers<[1], [0], [0], [1], [0, 0, 1, 1], [], []>} : vector<8x32xf32>, vector<32x64xf32>, vector<8x64xf32> -> vector<8x64xf32>
      %81 = arith.addf %80, %5 : vector<8x64xf32>
      %82 = math.tanh %81 : vector<8x64xf32>
      %cst_44 = arith.constant dense<0.000000e+00> : vector<8x32xf32>
      %83 = tpu.matmul %82, %4, %cst_44 {dimension_numbers = #tpu.dot_dimension_numbers<[1], [0], [0], [1], [0, 0, 1, 1], [], []>} : vector<8x64xf32>, vector<64x32xf32>, vector<8x32xf32> -> vector<8x32xf32>
      %84 = arith.addf %79, %83 : vector<8x32xf32>
      %85 = arith.addf %84, %8 : vector<8x32xf32>
      %cst_45 = arith.constant dense<0.000000e+00> : vector<8x64xf32>
      %86 = tpu.matmul %85, %3, %cst_45 {dimension_numbers = #tpu.dot_dimension_numbers<[1], [0], [0], [1], [0, 0, 1, 1], [], []>} : vector<8x32xf32>, vector<32x64xf32>, vector<8x64xf32> -> vector<8x64xf32>
      %87 = arith.addf %86, %5 : vector<8x64xf32>
      %88 = math.tanh %87 : vector<8x64xf32>
      %cst_46 = arith.constant dense<0.000000e+00> : vector<8x32xf32>
      %89 = tpu.matmul %88, %4, %cst_46 {dimension_numbers = #tpu.dot_dimension_numbers<[1], [0], [0], [1], [0, 0, 1, 1], [], []>} : vector<8x64xf32>, vector<64x32xf32>, vector<8x32xf32> -> vector<8x32xf32>
      %90 = arith.addf %85, %89 : vector<8x32xf32>
      %91 = arith.addf %90, %8 : vector<8x32xf32>
      %cst_47 = arith.constant dense<0.000000e+00> : vector<8x64xf32>
      %92 = tpu.matmul %91, %3, %cst_47 {dimension_numbers = #tpu.dot_dimension_numbers<[1], [0], [0], [1], [0, 0, 1, 1], [], []>} : vector<8x32xf32>, vector<32x64xf32>, vector<8x64xf32> -> vector<8x64xf32>
      %93 = arith.addf %92, %5 : vector<8x64xf32>
      %94 = math.tanh %93 : vector<8x64xf32>
      %cst_48 = arith.constant dense<0.000000e+00> : vector<8x32xf32>
      %95 = tpu.matmul %94, %4, %cst_48 {dimension_numbers = #tpu.dot_dimension_numbers<[1], [0], [0], [1], [0, 0, 1, 1], [], []>} : vector<8x64xf32>, vector<64x32xf32>, vector<8x32xf32> -> vector<8x32xf32>
      %96 = arith.addf %91, %95 : vector<8x32xf32>
      %97 = arith.addf %96, %8 : vector<8x32xf32>
      %cst_49 = arith.constant dense<0.000000e+00> : vector<8x64xf32>
      %98 = tpu.matmul %97, %3, %cst_49 {dimension_numbers = #tpu.dot_dimension_numbers<[1], [0], [0], [1], [0, 0, 1, 1], [], []>} : vector<8x32xf32>, vector<32x64xf32>, vector<8x64xf32> -> vector<8x64xf32>
      %99 = arith.addf %98, %5 : vector<8x64xf32>
      %100 = math.tanh %99 : vector<8x64xf32>
      %cst_50 = arith.constant dense<0.000000e+00> : vector<8x32xf32>
      %101 = tpu.matmul %100, %4, %cst_50 {dimension_numbers = #tpu.dot_dimension_numbers<[1], [0], [0], [1], [0, 0, 1, 1], [], []>} : vector<8x64xf32>, vector<64x32xf32>, vector<8x32xf32> -> vector<8x32xf32>
      %102 = arith.addf %97, %101 : vector<8x32xf32>
      %103 = arith.addf %102, %8 : vector<8x32xf32>
      %cst_51 = arith.constant dense<0.000000e+00> : vector<8x64xf32>
      %104 = tpu.matmul %103, %3, %cst_51 {dimension_numbers = #tpu.dot_dimension_numbers<[1], [0], [0], [1], [0, 0, 1, 1], [], []>} : vector<8x32xf32>, vector<32x64xf32>, vector<8x64xf32> -> vector<8x64xf32>
      %105 = arith.addf %104, %5 : vector<8x64xf32>
      %106 = math.tanh %105 : vector<8x64xf32>
      %cst_52 = arith.constant dense<0.000000e+00> : vector<8x32xf32>
      %107 = tpu.matmul %106, %4, %cst_52 {dimension_numbers = #tpu.dot_dimension_numbers<[1], [0], [0], [1], [0, 0, 1, 1], [], []>} : vector<8x64xf32>, vector<64x32xf32>, vector<8x32xf32> -> vector<8x32xf32>
      %108 = arith.addf %103, %107 : vector<8x32xf32>
      %109 = arith.addf %108, %8 : vector<8x32xf32>
      %cst_53 = arith.constant dense<0.000000e+00> : vector<8x64xf32>
      %110 = tpu.matmul %109, %3, %cst_53 {dimension_numbers = #tpu.dot_dimension_numbers<[1], [0], [0], [1], [0, 0, 1, 1], [], []>} : vector<8x32xf32>, vector<32x64xf32>, vector<8x64xf32> -> vector<8x64xf32>
      %111 = arith.addf %110, %5 : vector<8x64xf32>
      %112 = math.tanh %111 : vector<8x64xf32>
      %cst_54 = arith.constant dense<0.000000e+00> : vector<8x32xf32>
      %113 = tpu.matmul %112, %4, %cst_54 {dimension_numbers = #tpu.dot_dimension_numbers<[1], [0], [0], [1], [0, 0, 1, 1], [], []>} : vector<8x64xf32>, vector<64x32xf32>, vector<8x32xf32> -> vector<8x32xf32>
      %114 = arith.addf %109, %113 : vector<8x32xf32>
      %115 = arith.addf %114, %8 : vector<8x32xf32>
      %c8_i32 = arith.constant 8 : i32
      %116 = arith.muli %arg12, %c8_i32 : i32
      %117 = tpu.assume_multiple %116, 8 : i32
      %118 = tpu.iota {dimensions = array<i32: 1>} : vector<1x8x1xi32>
      %119 = vector.shape_cast %arg13 : vector<8x32xf32> to vector<8x1x32xf32>
      %120 = vector.shape_cast %119 : vector<8x1x32xf32> to vector<8x1x32xf32>
      %121 = vector.broadcast %120 : vector<8x1x32xf32> to vector<8x8x32xf32>
      %c1_i32_55 = arith.constant 1 : i32
      %122 = vector.broadcast %c1_i32_55 : i32 to vector<1x8x1xi32>
      %123 = arith.cmpi eq, %118, %122 : vector<1x8x1xi32>
      %124 = vector.shape_cast %73 : vector<8x32xf32> to vector<8x1x32xf32>
      %125 = vector.shape_cast %123 : vector<1x8x1xi1> to vector<1x8x1xi1>
      %126 = vector.broadcast %125 : vector<1x8x1xi1> to vector<8x8x32xi1>
      %127 = vector.shape_cast %124 : vector<8x1x32xf32> to vector<8x1x32xf32>
      %128 = vector.broadcast %127 : vector<8x1x32xf32> to vector<8x8x32xf32>
      %129 = arith.select %126, %128, %121 : vector<8x8x32xi1>, vector<8x8x32xf32>
      %c2_i32_56 = arith.constant 2 : i32
      %130 = vector.broadcast %c2_i32_56 : i32 to vector<1x8x1xi32>
      %131 = arith.cmpi eq, %118, %130 : vector<1x8x1xi32>
      %132 = vector.shape_cast %79 : vector<8x32xf32> to vector<8x1x32xf32>
      %133 = vector.shape_cast %131 : vector<1x8x1xi1> to vector<1x8x1xi1>
      %134 = vector.broadcast %133 : vector<1x8x1xi1> to vector<8x8x32xi1>
      %135 = vector.shape_cast %132 : vector<8x1x32xf32> to vector<8x1x32xf32>
      %136 = vector.broadcast %135 : vector<8x1x32xf32> to vector<8x8x32xf32>
      %137 = arith.select %134, %136, %129 : vector<8x8x32xi1>, vector<8x8x32xf32>
      %c3_i32 = arith.constant 3 : i32
      %138 = vector.broadcast %c3_i32 : i32 to vector<1x8x1xi32>
      %139 = arith.cmpi eq, %118, %138 : vector<1x8x1xi32>
      %140 = vector.shape_cast %85 : vector<8x32xf32> to vector<8x1x32xf32>
      %141 = vector.shape_cast %139 : vector<1x8x1xi1> to vector<1x8x1xi1>
      %142 = vector.broadcast %141 : vector<1x8x1xi1> to vector<8x8x32xi1>
      %143 = vector.shape_cast %140 : vector<8x1x32xf32> to vector<8x1x32xf32>
      %144 = vector.broadcast %143 : vector<8x1x32xf32> to vector<8x8x32xf32>
      %145 = arith.select %142, %144, %137 : vector<8x8x32xi1>, vector<8x8x32xf32>
      %c4_i32 = arith.constant 4 : i32
      %146 = vector.broadcast %c4_i32 : i32 to vector<1x8x1xi32>
      %147 = arith.cmpi eq, %118, %146 : vector<1x8x1xi32>
      %148 = vector.shape_cast %91 : vector<8x32xf32> to vector<8x1x32xf32>
      %149 = vector.shape_cast %147 : vector<1x8x1xi1> to vector<1x8x1xi1>
      %150 = vector.broadcast %149 : vector<1x8x1xi1> to vector<8x8x32xi1>
      %151 = vector.shape_cast %148 : vector<8x1x32xf32> to vector<8x1x32xf32>
      %152 = vector.broadcast %151 : vector<8x1x32xf32> to vector<8x8x32xf32>
      %153 = arith.select %150, %152, %145 : vector<8x8x32xi1>, vector<8x8x32xf32>
      %c5_i32 = arith.constant 5 : i32
      %154 = vector.broadcast %c5_i32 : i32 to vector<1x8x1xi32>
      %155 = arith.cmpi eq, %118, %154 : vector<1x8x1xi32>
      %156 = vector.shape_cast %97 : vector<8x32xf32> to vector<8x1x32xf32>
      %157 = vector.shape_cast %155 : vector<1x8x1xi1> to vector<1x8x1xi1>
      %158 = vector.broadcast %157 : vector<1x8x1xi1> to vector<8x8x32xi1>
      %159 = vector.shape_cast %156 : vector<8x1x32xf32> to vector<8x1x32xf32>
      %160 = vector.broadcast %159 : vector<8x1x32xf32> to vector<8x8x32xf32>
      %161 = arith.select %158, %160, %153 : vector<8x8x32xi1>, vector<8x8x32xf32>
      %c6_i32 = arith.constant 6 : i32
      %162 = vector.broadcast %c6_i32 : i32 to vector<1x8x1xi32>
      %163 = arith.cmpi eq, %118, %162 : vector<1x8x1xi32>
      %164 = vector.shape_cast %103 : vector<8x32xf32> to vector<8x1x32xf32>
      %165 = vector.shape_cast %163 : vector<1x8x1xi1> to vector<1x8x1xi1>
      %166 = vector.broadcast %165 : vector<1x8x1xi1> to vector<8x8x32xi1>
      %167 = vector.shape_cast %164 : vector<8x1x32xf32> to vector<8x1x32xf32>
      %168 = vector.broadcast %167 : vector<8x1x32xf32> to vector<8x8x32xf32>
      %169 = arith.select %166, %168, %161 : vector<8x8x32xi1>, vector<8x8x32xf32>
      %c7_i32 = arith.constant 7 : i32
      %170 = vector.broadcast %c7_i32 : i32 to vector<1x8x1xi32>
      %171 = arith.cmpi eq, %118, %170 : vector<1x8x1xi32>
      %172 = vector.shape_cast %109 : vector<8x32xf32> to vector<8x1x32xf32>
      %173 = vector.shape_cast %171 : vector<1x8x1xi1> to vector<1x8x1xi1>
      %174 = vector.broadcast %173 : vector<1x8x1xi1> to vector<8x8x32xi1>
      %175 = vector.shape_cast %172 : vector<8x1x32xf32> to vector<8x1x32xf32>
      %176 = vector.broadcast %175 : vector<8x1x32xf32> to vector<8x8x32xf32>
      %177 = arith.select %174, %176, %169 : vector<8x8x32xi1>, vector<8x8x32xf32>
      %c0_57 = arith.constant 0 : index
      %178 = arith.index_cast %117 : i32 to index
      %c0_58 = arith.constant 0 : index
      %179 = vector.load %arg11[%c0_57, %178, %c0_58] : memref<8x16x32xf32, #tpu.memory_space<vmem>>, vector<8x8x32xf32>
      tpu.vector_store %arg11[%c0_57, %178, %c0_58], %177 {strides = array<i32>} : memref<8x16x32xf32, #tpu.memory_space<vmem>>, vector<8x8x32xf32>,
      scf.yield %115 : vector<8x32xf32>
    }
    %c2_i32_11 = arith.constant 2 : i32
    %c0_12 = arith.constant 0 : index
    %c0_13 = arith.constant 0 : index
    %12 = vector.load %arg10[%c0_12, %c0_13] : memref<8x32xf32, #tpu.memory_space<vmem>>, vector<8x32xf32>
    tpu.vector_store %arg10[%c0_12, %c0_13], %11 {strides = array<i32>} : memref<8x32xf32, #tpu.memory_space<vmem>>, vector<8x32xf32>,
    %c0_14 = arith.constant 0 : index
    %c0_15 = arith.constant 0 : index
    %c0_16 = arith.constant 0 : index
    %13 = vector.load %arg11[%c0_14, %c0_15, %c0_16] : memref<8x16x32xf32, #tpu.memory_space<vmem>>, vector<8x16x32xf32>
    %14 = vector.extract_strided_slice %13 {offsets = [0, 0, 0], sizes = [8, 16, 16], strides = [1, 1, 1]} : vector<8x16x32xf32> to vector<8x16x16xf32>
    %c0_17 = arith.constant 0 : index
    %c0_18 = arith.constant 0 : index
    %c0_19 = arith.constant 0 : index
    %15 = vector.load %arg8[%c0_17, %c0_18, %c0_19] : memref<8x16x16xf32, #tpu.memory_space<vmem>>, vector<8x16x16xf32>
    tpu.vector_store %arg8[%c0_17, %c0_18, %c0_19], %14 {strides = array<i32>} : memref<8x16x16xf32, #tpu.memory_space<vmem>>, vector<8x16x16xf32>,
    %16 = vector.shape_cast %13 : vector<8x16x32xf32> to vector<128x32xf32>
    %c0_20 = arith.constant 0 : index
    %c0_21 = arith.constant 0 : index
    %17 = vector.load %arg7[%c0_20, %c0_21] : memref<32x8xf32, #tpu.memory_space<vmem>>, vector<32x8xf32>
    %cst = arith.constant dense<0.000000e+00> : vector<128x8xf32>
    %18 = tpu.matmul %16, %17, %cst {dimension_numbers = #tpu.dot_dimension_numbers<[1], [0], [0], [1], [0, 0, 1, 1], [], []>} : vector<128x32xf32>, vector<32x8xf32>, vector<128x8xf32> -> vector<128x8xf32>
    %19 = vector.shape_cast %18 : vector<128x8xf32> to vector<8x16x8xf32>
    %20 = vector.extract_strided_slice %19 {offsets = [0, 0, 0], sizes = [1, 16, 8], strides = [1, 1, 1]} : vector<8x16x8xf32> to vector<1x16x8xf32>
    %21 = vector.shape_cast %20 : vector<1x16x8xf32> to vector<16x8xf32>
    %22 = tpu.transpose %21, [1, 0] : vector<16x8xf32> -> vector<8x16xf32>
    %c0_22 = arith.constant 0 : index
    %c0_23 = arith.constant 0 : index
    %c0_24 = arith.constant 0 : index
    %23 = vector.load %arg9[%c0_22, %c0_23, %c0_24] : memref<8x8x16xf32, #tpu.memory_space<vmem>>, vector<1x8x16xf32>
    %24 = vector.shape_cast %23 : vector<1x8x16xf32> to vector<8x16xf32>
    %25 = vector.shape_cast %22 : vector<8x16xf32> to vector<1x8x16xf32>
    tpu.vector_store %arg9[%c0_22, %c0_23, %c0_24], %25 {strides = array<i32>} : memref<8x8x16xf32, #tpu.memory_space<vmem>>, vector<1x8x16xf32>,
    %26 = vector.extract_strided_slice %19 {offsets = [1, 0, 0], sizes = [1, 16, 8], strides = [1, 1, 1]} : vector<8x16x8xf32> to vector<1x16x8xf32>
    %27 = vector.shape_cast %26 : vector<1x16x8xf32> to vector<16x8xf32>
    %28 = tpu.transpose %27, [1, 0] : vector<16x8xf32> -> vector<8x16xf32>
    %c1 = arith.constant 1 : index
    %c0_25 = arith.constant 0 : index
    %c0_26 = arith.constant 0 : index
    %29 = vector.load %arg9[%c1, %c0_25, %c0_26] : memref<8x8x16xf32, #tpu.memory_space<vmem>>, vector<1x8x16xf32>
    %30 = vector.shape_cast %29 : vector<1x8x16xf32> to vector<8x16xf32>
    %31 = vector.shape_cast %28 : vector<8x16xf32> to vector<1x8x16xf32>
    tpu.vector_store %arg9[%c1, %c0_25, %c0_26], %31 {strides = array<i32>} : memref<8x8x16xf32, #tpu.memory_space<vmem>>, vector<1x8x16xf32>,
    %32 = vector.extract_strided_slice %19 {offsets = [2, 0, 0], sizes = [1, 16, 8], strides = [1, 1, 1]} : vector<8x16x8xf32> to vector<1x16x8xf32>
    %33 = vector.shape_cast %32 : vector<1x16x8xf32> to vector<16x8xf32>
    %34 = tpu.transpose %33, [1, 0] : vector<16x8xf32> -> vector<8x16xf32>
    %c2 = arith.constant 2 : index
    %c0_27 = arith.constant 0 : index
    %c0_28 = arith.constant 0 : index
    %35 = vector.load %arg9[%c2, %c0_27, %c0_28] : memref<8x8x16xf32, #tpu.memory_space<vmem>>, vector<1x8x16xf32>
    %36 = vector.shape_cast %35 : vector<1x8x16xf32> to vector<8x16xf32>
    %37 = vector.shape_cast %34 : vector<8x16xf32> to vector<1x8x16xf32>
    tpu.vector_store %arg9[%c2, %c0_27, %c0_28], %37 {strides = array<i32>} : memref<8x8x16xf32, #tpu.memory_space<vmem>>, vector<1x8x16xf32>,
    %38 = vector.extract_strided_slice %19 {offsets = [3, 0, 0], sizes = [1, 16, 8], strides = [1, 1, 1]} : vector<8x16x8xf32> to vector<1x16x8xf32>
    %39 = vector.shape_cast %38 : vector<1x16x8xf32> to vector<16x8xf32>
    %40 = tpu.transpose %39, [1, 0] : vector<16x8xf32> -> vector<8x16xf32>
    %c3 = arith.constant 3 : index
    %c0_29 = arith.constant 0 : index
    %c0_30 = arith.constant 0 : index
    %41 = vector.load %arg9[%c3, %c0_29, %c0_30] : memref<8x8x16xf32, #tpu.memory_space<vmem>>, vector<1x8x16xf32>
    %42 = vector.shape_cast %41 : vector<1x8x16xf32> to vector<8x16xf32>
    %43 = vector.shape_cast %40 : vector<8x16xf32> to vector<1x8x16xf32>
    tpu.vector_store %arg9[%c3, %c0_29, %c0_30], %43 {strides = array<i32>} : memref<8x8x16xf32, #tpu.memory_space<vmem>>, vector<1x8x16xf32>,
    %44 = vector.extract_strided_slice %19 {offsets = [4, 0, 0], sizes = [1, 16, 8], strides = [1, 1, 1]} : vector<8x16x8xf32> to vector<1x16x8xf32>
    %45 = vector.shape_cast %44 : vector<1x16x8xf32> to vector<16x8xf32>
    %46 = tpu.transpose %45, [1, 0] : vector<16x8xf32> -> vector<8x16xf32>
    %c4 = arith.constant 4 : index
    %c0_31 = arith.constant 0 : index
    %c0_32 = arith.constant 0 : index
    %47 = vector.load %arg9[%c4, %c0_31, %c0_32] : memref<8x8x16xf32, #tpu.memory_space<vmem>>, vector<1x8x16xf32>
    %48 = vector.shape_cast %47 : vector<1x8x16xf32> to vector<8x16xf32>
    %49 = vector.shape_cast %46 : vector<8x16xf32> to vector<1x8x16xf32>
    tpu.vector_store %arg9[%c4, %c0_31, %c0_32], %49 {strides = array<i32>} : memref<8x8x16xf32, #tpu.memory_space<vmem>>, vector<1x8x16xf32>,
    %50 = vector.extract_strided_slice %19 {offsets = [5, 0, 0], sizes = [1, 16, 8], strides = [1, 1, 1]} : vector<8x16x8xf32> to vector<1x16x8xf32>
    %51 = vector.shape_cast %50 : vector<1x16x8xf32> to vector<16x8xf32>
    %52 = tpu.transpose %51, [1, 0] : vector<16x8xf32> -> vector<8x16xf32>
    %c5 = arith.constant 5 : index
    %c0_33 = arith.constant 0 : index
    %c0_34 = arith.constant 0 : index
    %53 = vector.load %arg9[%c5, %c0_33, %c0_34] : memref<8x8x16xf32, #tpu.memory_space<vmem>>, vector<1x8x16xf32>
    %54 = vector.shape_cast %53 : vector<1x8x16xf32> to vector<8x16xf32>
    %55 = vector.shape_cast %52 : vector<8x16xf32> to vector<1x8x16xf32>
    tpu.vector_store %arg9[%c5, %c0_33, %c0_34], %55 {strides = array<i32>} : memref<8x8x16xf32, #tpu.memory_space<vmem>>, vector<1x8x16xf32>,
    %56 = vector.extract_strided_slice %19 {offsets = [6, 0, 0], sizes = [1, 16, 8], strides = [1, 1, 1]} : vector<8x16x8xf32> to vector<1x16x8xf32>
    %57 = vector.shape_cast %56 : vector<1x16x8xf32> to vector<16x8xf32>
    %58 = tpu.transpose %57, [1, 0] : vector<16x8xf32> -> vector<8x16xf32>
    %c6 = arith.constant 6 : index
    %c0_35 = arith.constant 0 : index
    %c0_36 = arith.constant 0 : index
    %59 = vector.load %arg9[%c6, %c0_35, %c0_36] : memref<8x8x16xf32, #tpu.memory_space<vmem>>, vector<1x8x16xf32>
    %60 = vector.shape_cast %59 : vector<1x8x16xf32> to vector<8x16xf32>
    %61 = vector.shape_cast %58 : vector<8x16xf32> to vector<1x8x16xf32>
    tpu.vector_store %arg9[%c6, %c0_35, %c0_36], %61 {strides = array<i32>} : memref<8x8x16xf32, #tpu.memory_space<vmem>>, vector<1x8x16xf32>,
    %62 = vector.extract_strided_slice %19 {offsets = [7, 0, 0], sizes = [1, 16, 8], strides = [1, 1, 1]} : vector<8x16x8xf32> to vector<1x16x8xf32>
    %63 = vector.shape_cast %62 : vector<1x16x8xf32> to vector<16x8xf32>
    %64 = tpu.transpose %63, [1, 0] : vector<16x8xf32> -> vector<8x16xf32>
    %c7 = arith.constant 7 : index
    %c0_37 = arith.constant 0 : index
    %c0_38 = arith.constant 0 : index
    %65 = vector.load %arg9[%c7, %c0_37, %c0_38] : memref<8x8x16xf32, #tpu.memory_space<vmem>>, vector<1x8x16xf32>
    %66 = vector.shape_cast %65 : vector<1x8x16xf32> to vector<8x16xf32>
    %67 = vector.shape_cast %64 : vector<8x16xf32> to vector<1x8x16xf32>
    tpu.vector_store %arg9[%c7, %c0_37, %c0_38], %67 {strides = array<i32>} : memref<8x8x16xf32, #tpu.memory_space<vmem>>, vector<1x8x16xf32>,
    return
  }
  func.func @transform_0(%arg0: i32, %arg1: i32) -> (i32, i32) {
    %c0_i32 = arith.constant 0 : i32
    %c0_i32_0 = arith.constant 0 : i32
    return %arg0, %c0_i32 : i32, i32
  }
  func.func @transform_1(%arg0: i32, %arg1: i32) -> (i32, i32) {
    %c0_i32 = arith.constant 0 : i32
    %c0_i32_0 = arith.constant 0 : i32
    return %arg0, %c0_i32 : i32, i32
  }
  func.func @transform_2(%arg0: i32, %arg1: i32) -> (i32, i32) {
    %c0_i32 = arith.constant 0 : i32
    %c0_i32_0 = arith.constant 0 : i32
    %c0_i32_1 = arith.constant 0 : i32
    return %c0_i32, %c0_i32_0 : i32, i32
  }
  func.func @transform_3(%arg0: i32, %arg1: i32) -> (i32, i32) {
    %c0_i32 = arith.constant 0 : i32
    %c0_i32_0 = arith.constant 0 : i32
    %c0_i32_1 = arith.constant 0 : i32
    return %c0_i32, %c0_i32_0 : i32, i32
  }
  func.func @transform_4(%arg0: i32, %arg1: i32) -> (i32, i32) {
    %c0_i32 = arith.constant 0 : i32
    %c0_i32_0 = arith.constant 0 : i32
    %c0_i32_1 = arith.constant 0 : i32
    return %c0_i32, %c0_i32_0 : i32, i32
  }
  func.func @transform_5(%arg0: i32, %arg1: i32) -> (i32, i32) {
    %c0_i32 = arith.constant 0 : i32
    %c0_i32_0 = arith.constant 0 : i32
    %c0_i32_1 = arith.constant 0 : i32
    return %c0_i32, %c0_i32_0 : i32, i32
  }
  func.func @transform_6(%arg0: i32, %arg1: i32) -> (i32, i32, i32) {
    %c0_i32 = arith.constant 0 : i32
    %c0_i32_0 = arith.constant 0 : i32
    return %arg0, %arg1, %c0_i32 : i32, i32, i32
  }
  func.func @transform_7(%arg0: i32, %arg1: i32) -> (i32, i32, i32) {
    %c0_i32 = arith.constant 0 : i32
    %c0_i32_0 = arith.constant 0 : i32
    return %arg0, %c0_i32, %arg1 : i32, i32, i32
  }
}

</mosaic_0001>

<llo_original>
// kernel: tpu_custom_call.1
$region0: #{tpu_custom_call.1}
  #allocation0 [shape = 'u32[]', space=smem, size = 0x4, offset = 0x4, fixed_abs, tag = 'smem constant byte address 0x4 - core index']
  #allocation1 [shape = 'u32[72,128]{1,0:T(1,128)}', space=vmem, size = 0x9000, scoped, tag = 'internal scratch']
  #allocation2 [shape = 'f32[8,32]{1,0:T(8,128)}', space=vmem, size = 0x1000, scoped, tag = 'scratch operand']
  #allocation3 [shape = 'f32[8,16,32]{2,1,0:T(8,128)}', space=vmem, size = 0x10000, scoped, tag = 'scratch operand']
  %s0 = inlined_call_operand.vmem [shape: f32[8,32], index: 0, kind: input, shape index: {}]
  %s1 = inlined_call_operand.vmem [shape: f32[8,64], index: 1, kind: input, shape index: {}]
  %s2 = inlined_call_operand.vmem [shape: f32[32,64], index: 2, kind: input, shape index: {}]
  %s3 = inlined_call_operand.vmem [shape: f32[64,32], index: 3, kind: input, shape index: {}]
  %s4 = inlined_call_operand.vmem [shape: f32[1,32], index: 4, kind: input, shape index: {}]
  %s5 = inlined_call_operand.vmem [shape: f32[32,8], index: 5, kind: input, shape index: {}]
  %s6 = inlined_call_operand.hbm [shape: f32[8,16,16], index: 6, kind: output, shape index: {0}]
  %s7 = inlined_call_operand.hbm [shape: f32[8,8,16], index: 7, kind: output, shape index: {1}]
  %8 = xla_tuple %s6, %s7
  %s9 = sld [smem:[#allocation0]]
  $region53: #{tpu_custom_call.1} parent=0
    _
  %s11 = ssub.s32 1, %s9
  %s12 = scalar_select 0, %s11, %s9
  $region1: #{tpu_custom_call.1} parent=0
    #allocation4 [shape = 'u8[65536]{0}', space=vmem, size = 0x10000, scoped, tag = 'output window, operand 0, single buffered']
    #allocation5 [shape = 's32[1]{0}', space=sflag, size = 0x4, scoped, tag = 'scoped memory for tpu_custom_call.1']
    #allocation6 [shape = 'u8[32768]{0}', space=vmem, size = 0x8000, scoped, tag = 'output window, operand 1, single buffered']
    #allocation7 [shape = 's32[1]{0}', space=sflag, size = 0x4, scoped, tag = 'scoped memory for tpu_custom_call.1']
    %13 = vsyncpa [#allocation5], 0
    %14 = vsyncpa [#allocation7], 0
    // Predicated region
    $region2: #{tpu_custom_call.1} parent=1 // pred_check
      _
    $region3: #{tpu_custom_call.1} parent=1 // pred_check_branch
      %16 = sbr.rel (0) target = $region5
    $region4: #{tpu_custom_call.1} parent=1 // pred_region
      _
    $region5: #{tpu_custom_call.1} parent=1 // pred_fallthru
      _
    // Predicated region
    $region6: #{tpu_custom_call.1} parent=1 // pred_check
      _
    $region7: #{tpu_custom_call.1} parent=1 // pred_check_branch
      %18 = sbr.rel (0) target = $region9
    $region8: #{tpu_custom_call.1} parent=1 // pred_region
      _
    $region9: #{tpu_custom_call.1} parent=1 // pred_fallthru
      _
    // Predicated region
    $region10: #{tpu_custom_call.1} parent=1 // pred_check
      _
    $region11: #{tpu_custom_call.1} parent=1 // pred_check_branch
      %20 = sbr.rel (0) target = $region13
    $region12: #{tpu_custom_call.1} parent=1 // pred_region
      _
    $region13: #{tpu_custom_call.1} parent=1 // pred_fallthru
      _
    // Predicated region
    $region14: #{tpu_custom_call.1} parent=1 // pred_check
      _
    $region15: #{tpu_custom_call.1} parent=1 // pred_check_branch
      %22 = sbr.rel (0) target = $region17
    $region16: #{tpu_custom_call.1} parent=1 // pred_region
      _
    $region17: #{tpu_custom_call.1} parent=1 // pred_fallthru
      _
    // Predicated region
    $region18: #{tpu_custom_call.1} parent=1 // pred_check
      _
    $region19: #{tpu_custom_call.1} parent=1 // pred_check_branch
      %24 = sbr.rel (0) target = $region21
    $region20: #{tpu_custom_call.1} parent=1 // pred_region
      _
    $region21: #{tpu_custom_call.1} parent=1 // pred_fallthru
      _
    // Predicated region
    $region22: #{tpu_custom_call.1} parent=1 // pred_check
      _
    $region23: #{tpu_custom_call.1} parent=1 // pred_check_branch
      %26 = sbr.rel (0) target = $region25
    $region24: #{tpu_custom_call.1} parent=1 // pred_region
      _
    $region25: #{tpu_custom_call.1} parent=1 // pred_fallthru
      _
    %p27 = scmp.eq.s32.totalorder 0, 0
    // Predicated region
    $region26: #{tpu_custom_call.1} parent=1 // pred_check
      %p28 = pneg %p27
    $region27: #{tpu_custom_call.1} parent=1 // pred_check_branch
      %30 = sbr.rel (%p28) target = $region29
    $region28: #{tpu_custom_call.1} parent=1 // pred_region
      %v31 = vld [vmem:[%s0] sm:$0xff]
      %vm32 = vcmask 261120
      %33 = vst.msk [vmem:[#allocation2] sm:$0xff] %vm32, %v31
    $region29: #{tpu_custom_call.1} parent=1 // pred_fallthru
      _
    %v34 = vld [vmem:[%s2] sm:$0xff]
    %v35 = vld [vmem:[%s2 + $0x8] sm:$0xff]
    %v36 = vld [vmem:[%s2 + $0x10] sm:$0xff]
    %v37 = vld [vmem:[%s2 + $0x18] sm:$0xff]
    %v38 = vld [vmem:[%s3] sm:$0xff]
    %v39 = vld [vmem:[%s3 + $0x8] sm:$0xff]
    %v40 = vld [vmem:[%s3 + $0x10] sm:$0xff]
    %v41 = vld [vmem:[%s3 + $0x18] sm:$0xff]
    %v42 = vld [vmem:[%s3 + $0x20] sm:$0xff]
    %v43 = vld [vmem:[%s3 + $0x28] sm:$0xff]
    %v44 = vld [vmem:[%s3 + $0x30] sm:$0xff]
    %v45 = vld [vmem:[%s3 + $0x38] sm:$0xff]
    %v46 = vld [vmem:[%s1] sm:$0xff]
    %v47 = vld [vmem:[%s4] sm:$0x1]
    %v49 = vperm.slane %v47, 0
    %v51 = vld [vmem:[#allocation2] sm:$0xff]
    loop: start=0, step=1, limit=2
    $region30: #{tpu_custom_call.1} parent=1 // loop_pre_header
      _
    $region31: #{tpu_custom_call.1} parent=1 // loop_header
      %s53 = sphi 0, %s57
      %p54 = scmp.ge.s32.totalorder %s53, 2
      %v58 = vphi %v51, %v452
    $region32: #{tpu_custom_call.1} parent=1 // loop_header_branch
      %56 = sbr.rel (%p54) target = $region36
    $region33: #{tpu_custom_call.1} parent=1 // loop_body
      %vm59 = vcmask 261120
      %v61 = vsel %vm59, %v58, 0
      %63 = vmatpush.msra.mxu0 0.0
      %64 = vmatpush.msra.mxu0 0.0
      %65 = vmatpush.msra.mxu0 0.0
      %66 = vmatpush.msra.mxu0 0.0
      %67 = vmatpush.msra.mxu0 0.0
      %68 = vmatpush.msra.mxu0 0.0
      %69 = vmatpush.msra.mxu0 0.0
      %70 = vmatpush.msra.mxu0 0.0
      %71 = vmatpush.msra.mxu0 0.0
      %72 = vmatpush.msra.mxu0 0.0
      %73 = vmatpush.msra.mxu0 0.0
      %74 = vmatpush.msra.mxu0 0.0
      %75 = vmatpush.msra.mxu0 %v37
      %76 = vmatpush.msra.mxu0 %v36
      %77 = vmatpush.msra.mxu0 %v35
      %78 = vmatpush.msra.mxu0 %v34
      %79 = vmatmul.f32.gmra.mxu0 %v61
      %v80 = vpop.f32.mrf.mxu0
      %v81 = vadd.f32 %v46, %v80
      %82 = vdwg.mxu0
      %v83 = vtanh.pop %v81
      %vm84 = vcmask 523264
      %v86 = vsel %vm84, %v83, 0
      %88 = vmatpush.msra.mxu0 0.0
      %89 = vmatpush.msra.mxu0 0.0
      %90 = vmatpush.msra.mxu0 0.0
      %91 = vmatpush.msra.mxu0 0.0
      %92 = vmatpush.msra.mxu0 0.0
      %93 = vmatpush.msra.mxu0 0.0
      %94 = vmatpush.msra.mxu0 0.0
      %95 = vmatpush.msra.mxu0 0.0
      %96 = vmatpush.msra.mxu0 %v45
      %97 = vmatpush.msra.mxu0 %v44
      %98 = vmatpush.msra.mxu0 %v43
      %99 = vmatpush.msra.mxu0 %v42
      %100 = vmatpush.msra.mxu0 %v41
      %101 = vmatpush.msra.mxu0 %v40
      %102 = vmatpush.msra.mxu0 %v39
      %103 = vmatpush.msra.mxu0 %v38
      %104 = vmatmul.f32.gmra.mxu0 %v86
      %v105 = vpop.f32.mrf.mxu0
      %v106 = vadd.f32 0.0, %v105
      %107 = vdwg.mxu0
      %v108 = vadd.f32 %v58, %v106
      %v109 = vadd.f32 %v108, %v49
      %v111 = vsel %vm59, %v109, 0
      %113 = vmatpush.msra.mxu0 0.0
      %114 = vmatpush.msra.mxu0 0.0
      %115 = vmatpush.msra.mxu0 0.0
      %116 = vmatpush.msra.mxu0 0.0
      %117 = vmatpush.msra.mxu0 0.0
      %118 = vmatpush.msra.mxu0 0.0
      %119 = vmatpush.msra.mxu0 0.0
      %120 = vmatpush.msra.mxu0 0.0
      %121 = vmatpush.msra.mxu0 0.0
      %122 = vmatpush.msra.mxu0 0.0
      %123 = vmatpush.msra.mxu0 0.0
      %124 = vmatpush.msra.mxu0 0.0
      %125 = vmatpush.msra.mxu0 %v37
      %126 = vmatpush.msra.mxu0 %v36
      %127 = vmatpush.msra.mxu0 %v35
      %128 = vmatpush.msra.mxu0 %v34
      %129 = vmatmul.f32.gmra.mxu0 %v111
      %v130 = vpop.f32.mrf.mxu0
      %v131 = vadd.f32 %v46, %v130
      %132 = vdwg.mxu0
      %v133 = vtanh.pop %v131
      %v135 = vsel %vm84, %v133, 0
      %137 = vmatpush.msra.mxu0 0.0
      %138 = vmatpush.msra.mxu0 0.0
      %139 = vmatpush.msra.mxu0 0.0
      %140 = vmatpush.msra.mxu0 0.0
      %141 = vmatpush.msra.mxu0 0.0
      %142 = vmatpush.msra.mxu0 0.0
      %143 = vmatpush.msra.mxu0 0.0
      %144 = vmatpush.msra.mxu0 0.0
      %145 = vmatpush.msra.mxu0 %v45
      %146 = vmatpush.msra.mxu0 %v44
      %147 = vmatpush.msra.mxu0 %v43
      %148 = vmatpush.msra.mxu0 %v42
      %149 = vmatpush.msra.mxu0 %v41
      %150 = vmatpush.msra.mxu0 %v40
      %151 = vmatpush.msra.mxu0 %v39
      %152 = vmatpush.msra.mxu0 %v38
      %153 = vmatmul.f32.gmra.mxu0 %v135
      %v154 = vpop.f32.mrf.mxu0
      %v155 = vadd.f32 0.0, %v154
      %156 = vdwg.mxu0
      %v157 = vadd.f32 %v109, %v155
      %v158 = vadd.f32 %v157, %v49
      %v160 = vsel %vm59, %v158, 0
      %162 = vmatpush.msra.mxu0 0.0
      %163 = vmatpush.msra.mxu0 0.0
      %164 = vmatpush.msra.mxu0 0.0
      %165 = vmatpush.msra.mxu0 0.0
      %166 = vmatpush.msra.mxu0 0.0
      %167 = vmatpush.msra.mxu0 0.0
      %168 = vmatpush.msra.mxu0 0.0
      %169 = vmatpush.msra.mxu0 0.0
      %170 = vmatpush.msra.mxu0 0.0
      %171 = vmatpush.msra.mxu0 0.0
      %172 = vmatpush.msra.mxu0 0.0
      %173 = vmatpush.msra.mxu0 0.0
      %174 = vmatpush.msra.mxu0 %v37
      %175 = vmatpush.msra.mxu0 %v36
      %176 = vmatpush.msra.mxu0 %v35
      %177 = vmatpush.msra.mxu0 %v34
      %178 = vmatmul.f32.gmra.mxu0 %v160
      %v179 = vpop.f32.mrf.mxu0
      %v180 = vadd.f32 %v46, %v179
      %181 = vdwg.mxu0
      %v182 = vtanh.pop %v180
      %v184 = vsel %vm84, %v182, 0
      %186 = vmatpush.msra.mxu0 0.0
      %187 = vmatpush.msra.mxu0 0.0
      %188 = vmatpush.msra.mxu0 0.0
      %189 = vmatpush.msra.mxu0 0.0
      %190 = vmatpush.msra.mxu0 0.0
      %191 = vmatpush.msra.mxu0 0.0
      %192 = vmatpush.msra.mxu0 0.0
      %193 = vmatpush.msra.mxu0 0.0
      %194 = vmatpush.msra.mxu0 %v45
      %195 = vmatpush.msra.mxu0 %v44
      %196 = vmatpush.msra.mxu0 %v43
      %197 = vmatpush.msra.mxu0 %v42
      %198 = vmatpush.msra.mxu0 %v41
      %199 = vmatpush.msra.mxu0 %v40
      %200 = vmatpush.msra.mxu0 %v39
      %201 = vmatpush.msra.mxu0 %v38
      %202 = vmatmul.f32.gmra.mxu0 %v184
      %v203 = vpop.f32.mrf.mxu0
      %v204 = vadd.f32 0.0, %v203
      %205 = vdwg.mxu0
      %v206 = vadd.f32 %v158, %v204
      %v207 = vadd.f32 %v206, %v49
      %v209 = vsel %vm59, %v207, 0
      %211 = vmatpush.msra.mxu0 0.0
      %212 = vmatpush.msra.mxu0 0.0
      %213 = vmatpush.msra.mxu0 0.0
      %214 = vmatpush.msra.mxu0 0.0
      %215 = vmatpush.msra.mxu0 0.0
      %216 = vmatpush.msra.mxu0 0.0
      %217 = vmatpush.msra.mxu0 0.0
      %218 = vmatpush.msra.mxu0 0.0
      %219 = vmatpush.msra.mxu0 0.0
      %220 = vmatpush.msra.mxu0 0.0
      %221 = vmatpush.msra.mxu0 0.0
      %222 = vmatpush.msra.mxu0 0.0
      %223 = vmatpush.msra.mxu0 %v37
      %224 = vmatpush.msra.mxu0 %v36
      %225 = vmatpush.msra.mxu0 %v35
      %226 = vmatpush.msra.mxu0 %v34
      %227 = vmatmul.f32.gmra.mxu0 %v209
      %v228 = vpop.f32.mrf.mxu0
      %v229 = vadd.f32 %v46, %v228
      %230 = vdwg.mxu0
      %v231 = vtanh.pop %v229
      %v233 = vsel %vm84, %v231, 0
      %235 = vmatpush.msra.mxu0 0.0
      %236 = vmatpush.msra.mxu0 0.0
      %237 = vmatpush.msra.mxu0 0.0
      %238 = vmatpush.msra.mxu0 0.0
      %239 = vmatpush.msra.mxu0 0.0
      %240 = vmatpush.msra.mxu0 0.0
      %241 = vmatpush.msra.mxu0 0.0
      %242 = vmatpush.msra.mxu0 0.0
      %243 = vmatpush.msra.mxu0 %v45
      %244 = vmatpush.msra.mxu0 %v44
      %245 = vmatpush.msra.mxu0 %v43
      %246 = vmatpush.msra.mxu0 %v42
      %247 = vmatpush.msra.mxu0 %v41
      %248 = vmatpush.msra.mxu0 %v40
      %249 = vmatpush.msra.mxu0 %v39
      %250 = vmatpush.msra.mxu0 %v38
      %251 = vmatmul.f32.gmra.mxu0 %v233
      %v252 = vpop.f32.mrf.mxu0
      %v253 = vadd.f32 0.0, %v252
      %254 = vdwg.mxu0
      %v255 = vadd.f32 %v207, %v253
      %v256 = vadd.f32 %v255, %v49
      %v258 = vsel %vm59, %v256, 0
      %260 = vmatpush.msra.mxu0 0.0
      %261 = vmatpush.msra.mxu0 0.0
      %262 = vmatpush.msra.mxu0 0.0
      %263 = vmatpush.msra.mxu0 0.0
      %264 = vmatpush.msra.mxu0 0.0
      %265 = vmatpush.msra.mxu0 0.0
      %266 = vmatpush.msra.mxu0 0.0
      %267 = vmatpush.msra.mxu0 0.0
      %268 = vmatpush.msra.mxu0 0.0
      %269 = vmatpush.msra.mxu0 0.0
      %270 = vmatpush.msra.mxu0 0.0
      %271 = vmatpush.msra.mxu0 0.0
      %272 = vmatpush.msra.mxu0 %v37
      %273 = vmatpush.msra.mxu0 %v36
      %274 = vmatpush.msra.mxu0 %v35
      %275 = vmatpush.msra.mxu0 %v34
      %276 = vmatmul.f32.gmra.mxu0 %v258
      %v277 = vpop.f32.mrf.mxu0
      %v278 = vadd.f32 %v46, %v277
      %279 = vdwg.mxu0
      %v280 = vtanh.pop %v278
      %v282 = vsel %vm84, %v280, 0
      %284 = vmatpush.msra.mxu0 0.0
      %285 = vmatpush.msra.mxu0 0.0
      %286 = vmatpush.msra.mxu0 0.0
      %287 = vmatpush.msra.mxu0 0.0
      %288 = vmatpush.msra.mxu0 0.0
      %289 = vmatpush.msra.mxu0 0.0
      %290 = vmatpush.msra.mxu0 0.0
      %291 = vmatpush.msra.mxu0 0.0
      %292 = vmatpush.msra.mxu0 %v45
      %293 = vmatpush.msra.mxu0 %v44
      %294 = vmatpush.msra.mxu0 %v43
      %295 = vmatpush.msra.mxu0 %v42
      %296 = vmatpush.msra.mxu0 %v41
      %297 = vmatpush.msra.mxu0 %v40
      %298 = vmatpush.msra.mxu0 %v39
      %299 = vmatpush.msra.mxu0 %v38
      %300 = vmatmul.f32.gmra.mxu0 %v282
      %v301 = vpop.f32.mrf.mxu0
      %v302 = vadd.f32 0.0, %v301
      %303 = vdwg.mxu0
      %v304 = vadd.f32 %v256, %v302
      %v305 = vadd.f32 %v304, %v49
      %v307 = vsel %vm59, %v305, 0
      %309 = vmatpush.msra.mxu0 0.0
      %310 = vmatpush.msra.mxu0 0.0
      %311 = vmatpush.msra.mxu0 0.0
      %312 = vmatpush.msra.mxu0 0.0
      %313 = vmatpush.msra.mxu0 0.0
      %314 = vmatpush.msra.mxu0 0.0
      %315 = vmatpush.msra.mxu0 0.0
      %316 = vmatpush.msra.mxu0 0.0
      %317 = vmatpush.msra.mxu0 0.0
      %318 = vmatpush.msra.mxu0 0.0
      %319 = vmatpush.msra.mxu0 0.0
      %320 = vmatpush.msra.mxu0 0.0
      %321 = vmatpush.msra.mxu0 %v37
      %322 = vmatpush.msra.mxu0 %v36
      %323 = vmatpush.msra.mxu0 %v35
      %324 = vmatpush.msra.mxu0 %v34
      %325 = vmatmul.f32.gmra.mxu0 %v307
      %v326 = vpop.f32.mrf.mxu0
      %v327 = vadd.f32 %v46, %v326
      %328 = vdwg.mxu0
      %v329 = vtanh.pop %v327
      %v331 = vsel %vm84, %v329, 0
      %333 = vmatpush.msra.mxu0 0.0
      %334 = vmatpush.msra.mxu0 0.0
      %335 = vmatpush.msra.mxu0 0.0
      %336 = vmatpush.msra.mxu0 0.0
      %337 = vmatpush.msra.mxu0 0.0
      %338 = vmatpush.msra.mxu0 0.0
      %339 = vmatpush.msra.mxu0 0.0
      %340 = vmatpush.msra.mxu0 0.0
      %341 = vmatpush.msra.mxu0 %v45
      %342 = vmatpush.msra.mxu0 %v44
      %343 = vmatpush.msra.mxu0 %v43
      %344 = vmatpush.msra.mxu0 %v42
      %345 = vmatpush.msra.mxu0 %v41
      %346 = vmatpush.msra.mxu0 %v40
      %347 = vmatpush.msra.mxu0 %v39
      %348 = vmatpush.msra.mxu0 %v38
      %349 = vmatmul.f32.gmra.mxu0 %v331
      %v350 = vpop.f32.mrf.mxu0
      %v351 = vadd.f32 0.0, %v350
      %352 = vdwg.mxu0
      %v353 = vadd.f32 %v305, %v351
      %v354 = vadd.f32 %v353, %v49
      %v356 = vsel %vm59, %v354, 0
      %358 = vmatpush.msra.mxu0 0.0
      %359 = vmatpush.msra.mxu0 0.0
      %360 = vmatpush.msra.mxu0 0.0
      %361 = vmatpush.msra.mxu0 0.0
      %362 = vmatpush.msra.mxu0 0.0
      %363 = vmatpush.msra.mxu0 0.0
      %364 = vmatpush.msra.mxu0 0.0
      %365 = vmatpush.msra.mxu0 0.0
      %366 = vmatpush.msra.mxu0 0.0
      %367 = vmatpush.msra.mxu0 0.0
      %368 = vmatpush.msra.mxu0 0.0
      %369 = vmatpush.msra.mxu0 0.0
      %370 = vmatpush.msra.mxu0 %v37
      %371 = vmatpush.msra.mxu0 %v36
      %372 = vmatpush.msra.mxu0 %v35
      %373 = vmatpush.msra.mxu0 %v34
      %374 = vmatmul.f32.gmra.mxu0 %v356
      %v375 = vpop.f32.mrf.mxu0
      %v376 = vadd.f32 %v46, %v375
      %377 = vdwg.mxu0
      %v378 = vtanh.pop %v376
      %v380 = vsel %vm84, %v378, 0
      %382 = vmatpush.msra.mxu0 0.0
      %383 = vmatpush.msra.mxu0 0.0
      %384 = vmatpush.msra.mxu0 0.0
      %385 = vmatpush.msra.mxu0 0.0
      %386 = vmatpush.msra.mxu0 0.0
      %387 = vmatpush.msra.mxu0 0.0
      %388 = vmatpush.msra.mxu0 0.0
      %389 = vmatpush.msra.mxu0 0.0
      %390 = vmatpush.msra.mxu0 %v45
      %391 = vmatpush.msra.mxu0 %v44
      %392 = vmatpush.msra.mxu0 %v43
      %393 = vmatpush.msra.mxu0 %v42
      %394 = vmatpush.msra.mxu0 %v41
      %395 = vmatpush.msra.mxu0 %v40
      %396 = vmatpush.msra.mxu0 %v39
      %397 = vmatpush.msra.mxu0 %v38
      %398 = vmatmul.f32.gmra.mxu0 %v380
      %v399 = vpop.f32.mrf.mxu0
      %v400 = vadd.f32 0.0, %v399
      %401 = vdwg.mxu0
      %v402 = vadd.f32 %v354, %v400
      %v403 = vadd.f32 %v402, %v49
      %v405 = vsel %vm59, %v403, 0
      %407 = vmatpush.msra.mxu0 0.0
      %408 = vmatpush.msra.mxu0 0.0
      %409 = vmatpush.msra.mxu0 0.0
      %410 = vmatpush.msra.mxu0 0.0
      %411 = vmatpush.msra.mxu0 0.0
      %412 = vmatpush.msra.mxu0 0.0
      %413 = vmatpush.msra.mxu0 0.0
      %414 = vmatpush.msra.mxu0 0.0
      %415 = vmatpush.msra.mxu0 0.0
      %416 = vmatpush.msra.mxu0 0.0
      %417 = vmatpush.msra.mxu0 0.0
      %418 = vmatpush.msra.mxu0 0.0
      %419 = vmatpush.msra.mxu0 %v37
      %420 = vmatpush.msra.mxu0 %v36
      %421 = vmatpush.msra.mxu0 %v35
      %422 = vmatpush.msra.mxu0 %v34
      %423 = vmatmul.f32.gmra.mxu0 %v405
      %v424 = vpop.f32.mrf.mxu0
      %v425 = vadd.f32 %v46, %v424
      %426 = vdwg.mxu0
      %v427 = vtanh.pop %v425
      %v429 = vsel %vm84, %v427, 0
      %431 = vmatpush.msra.mxu0 0.0
      %432 = vmatpush.msra.mxu0 0.0
      %433 = vmatpush.msra.mxu0 0.0
      %434 = vmatpush.msra.mxu0 0.0
      %435 = vmatpush.msra.mxu0 0.0
      %436 = vmatpush.msra.mxu0 0.0
      %437 = vmatpush.msra.mxu0 0.0
      %438 = vmatpush.msra.mxu0 0.0
      %439 = vmatpush.msra.mxu0 %v45
      %440 = vmatpush.msra.mxu0 %v44
      %441 = vmatpush.msra.mxu0 %v43
      %442 = vmatpush.msra.mxu0 %v42
      %443 = vmatpush.msra.mxu0 %v41
      %444 = vmatpush.msra.mxu0 %v40
      %445 = vmatpush.msra.mxu0 %v39
      %446 = vmatpush.msra.mxu0 %v38
      %447 = vmatmul.f32.gmra.mxu0 %v429
      %v448 = vpop.f32.mrf.mxu0
      %v449 = vadd.f32 0.0, %v448
      %450 = vdwg.mxu0
      %v451 = vadd.f32 %v403, %v449
      %v452 = vadd.f32 %v451, %v49
      %s453 = smul.u32 %s53, 8
      %v454 = vlaneseq
      %v455 = vshrl.u32 %v454, 7
      %v456 = vrot.slane %v58, 1
      %v457 = vrot.slane %v58, 2
      %v458 = vrot.slane %v58, 3
      %v459 = vrot.slane %v58, 4
      %v460 = vrot.slane %v58, 5
      %v461 = vrot.slane %v58, 6
      %v462 = vrot.slane %v58, 7
      %v463 = vperm.slane %v58, 0
      %v464 = vperm.slane %v456, 0
      %v465 = vperm.slane %v457, 0
      %v466 = vperm.slane %v458, 0
      %v467 = vperm.slane %v459, 0
      %v468 = vperm.slane %v460, 0
      %v469 = vperm.slane %v461, 0
      %v470 = vperm.slane %v462, 0
      %vm479 = vcmp.eq.s32.totalorder %v455, 1
      %v480 = vrot.slane %v109, 1
      %v481 = vrot.slane %v109, 2
      %v482 = vrot.slane %v109, 3
      %v483 = vrot.slane %v109, 4
      %v484 = vrot.slane %v109, 5
      %v485 = vrot.slane %v109, 6
      %v486 = vrot.slane %v109, 7
      %v487 = vsel %vm479, 1, 0
      %vm488 = vcmp.eq.s32.totalorder %v487, 1
      %v489 = vperm.slane %v109, 0
      %v490 = vperm.slane %v480, 0
      %v491 = vperm.slane %v481, 0
      %v492 = vperm.slane %v482, 0
      %v493 = vperm.slane %v483, 0
      %v494 = vperm.slane %v484, 0
      %v495 = vperm.slane %v485, 0
      %v496 = vperm.slane %v486, 0
      %v505 = vsel %vm488, %v489, %v463
      %v506 = vsel %vm488, %v490, %v464
      %v507 = vsel %vm488, %v491, %v465
      %v508 = vsel %vm488, %v492, %v466
      %v509 = vsel %vm488, %v493, %v467
      %v510 = vsel %vm488, %v494, %v468
      %v511 = vsel %vm488, %v495, %v469
      %v512 = vsel %vm488, %v496, %v470
      %vm513 = vcmp.eq.s32.totalorder %v455, 2
      %v514 = vrot.slane %v158, 1
      %v515 = vrot.slane %v158, 2
      %v516 = vrot.slane %v158, 3
      %v517 = vrot.slane %v158, 4
      %v518 = vrot.slane %v158, 5
      %v519 = vrot.slane %v158, 6
      %v520 = vrot.slane %v158, 7
      %v521 = vsel %vm513, 1, 0
      %vm522 = vcmp.eq.s32.totalorder %v521, 1
      %v523 = vperm.slane %v158, 0
      %v524 = vperm.slane %v514, 0
      %v525 = vperm.slane %v515, 0
      %v526 = vperm.slane %v516, 0
      %v527 = vperm.slane %v517, 0
      %v528 = vperm.slane %v518, 0
      %v529 = vperm.slane %v519, 0
      %v530 = vperm.slane %v520, 0
      %v539 = vsel %vm522, %v523, %v505
      %v540 = vsel %vm522, %v524, %v506
      %v541 = vsel %vm522, %v525, %v507
      %v542 = vsel %vm522, %v526, %v508
      %v543 = vsel %vm522, %v527, %v509
      %v544 = vsel %vm522, %v528, %v510
      %v545 = vsel %vm522, %v529, %v511
      %v546 = vsel %vm522, %v530, %v512
      %vm547 = vcmp.eq.s32.totalorder %v455, 3
      %v548 = vrot.slane %v207, 1
      %v549 = vrot.slane %v207, 2
      %v550 = vrot.slane %v207, 3
      %v551 = vrot.slane %v207, 4
      %v552 = vrot.slane %v207, 5
      %v553 = vrot.slane %v207, 6
      %v554 = vrot.slane %v207, 7
      %v555 = vsel %vm547, 1, 0
      %vm556 = vcmp.eq.s32.totalorder %v555, 1
      %v557 = vperm.slane %v207, 0
      %v558 = vperm.slane %v548, 0
      %v559 = vperm.slane %v549, 0
      %v560 = vperm.slane %v550, 0
      %v561 = vperm.slane %v551, 0
      %v562 = vperm.slane %v552, 0
      %v563 = vperm.slane %v553, 0
      %v564 = vperm.slane %v554, 0
      %v573 = vsel %vm556, %v557, %v539
      %v574 = vsel %vm556, %v558, %v540
      %v575 = vsel %vm556, %v559, %v541
      %v576 = vsel %vm556, %v560, %v542
      %v577 = vsel %vm556, %v561, %v543
      %v578 = vsel %vm556, %v562, %v544
      %v579 = vsel %vm556, %v563, %v545
      %v580 = vsel %vm556, %v564, %v546
      %vm581 = vcmp.eq.s32.totalorder %v455, 4
      %v582 = vrot.slane %v256, 1
      %v583 = vrot.slane %v256, 2
      %v584 = vrot.slane %v256, 3
      %v585 = vrot.slane %v256, 4
      %v586 = vrot.slane %v256, 5
      %v587 = vrot.slane %v256, 6
      %v588 = vrot.slane %v256, 7
      %v589 = vsel %vm581, 1, 0
      %vm590 = vcmp.eq.s32.totalorder %v589, 1
      %v591 = vperm.slane %v256, 0
      %v592 = vperm.slane %v582, 0
      %v593 = vperm.slane %v583, 0
      %v594 = vperm.slane %v584, 0
      %v595 = vperm.slane %v585, 0
      %v596 = vperm.slane %v586, 0
      %v597 = vperm.slane %v587, 0
      %v598 = vperm.slane %v588, 0
      %v607 = vsel %vm590, %v591, %v573
      %v608 = vsel %vm590, %v592, %v574
      %v609 = vsel %vm590, %v593, %v575
      %v610 = vsel %vm590, %v594, %v576
      %v611 = vsel %vm590, %v595, %v577
      %v612 = vsel %vm590, %v596, %v578
      %v613 = vsel %vm590, %v597, %v579
      %v614 = vsel %vm590, %v598, %v580
      %vm615 = vcmp.eq.s32.totalorder %v455, 5
      %v616 = vrot.slane %v305, 1
      %v617 = vrot.slane %v305, 2
      %v618 = vrot.slane %v305, 3
      %v619 = vrot.slane %v305, 4
      %v620 = vrot.slane %v305, 5
      %v621 = vrot.slane %v305, 6
      %v622 = vrot.slane %v305, 7
      %v623 = vsel %vm615, 1, 0
      %vm624 = vcmp.eq.s32.totalorder %v623, 1
      %v625 = vperm.slane %v305, 0
      %v626 = vperm.slane %v616, 0
      %v627 = vperm.slane %v617, 0
      %v628 = vperm.slane %v618, 0
      %v629 = vperm.slane %v619, 0
      %v630 = vperm.slane %v620, 0
      %v631 = vperm.slane %v621, 0
      %v632 = vperm.slane %v622, 0
      %v641 = vsel %vm624, %v625, %v607
      %v642 = vsel %vm624, %v626, %v608
      %v643 = vsel %vm624, %v627, %v609
      %v644 = vsel %vm624, %v628, %v610
      %v645 = vsel %vm624, %v629, %v611
      %v646 = vsel %vm624, %v630, %v612
      %v647 = vsel %vm624, %v631, %v613
      %v648 = vsel %vm624, %v632, %v614
      %vm649 = vcmp.eq.s32.totalorder %v455, 6
      %v650 = vrot.slane %v354, 1
      %v651 = vrot.slane %v354, 2
      %v652 = vrot.slane %v354, 3
      %v653 = vrot.slane %v354, 4
      %v654 = vrot.slane %v354, 5
      %v655 = vrot.slane %v354, 6
      %v656 = vrot.slane %v354, 7
      %v657 = vsel %vm649, 1, 0
      %vm658 = vcmp.eq.s32.totalorder %v657, 1
      %v659 = vperm.slane %v354, 0
      %v660 = vperm.slane %v650, 0
      %v661 = vperm.slane %v651, 0
      %v662 = vperm.slane %v652, 0
      %v663 = vperm.slane %v653, 0
      %v664 = vperm.slane %v654, 0
      %v665 = vperm.slane %v655, 0
      %v666 = vperm.slane %v656, 0
      %v675 = vsel %vm658, %v659, %v641
      %v676 = vsel %vm658, %v660, %v642
      %v677 = vsel %vm658, %v661, %v643
      %v678 = vsel %vm658, %v662, %v644
      %v679 = vsel %vm658, %v663, %v645
      %v680 = vsel %vm658, %v664, %v646
      %v681 = vsel %vm658, %v665, %v647
      %v682 = vsel %vm658, %v666, %v648
      %vm683 = vcmp.eq.s32.totalorder %v455, 7
      %v684 = vrot.slane %v403, 1
      %v685 = vrot.slane %v403, 2
      %v686 = vrot.slane %v403, 3
      %v687 = vrot.slane %v403, 4
      %v688 = vrot.slane %v403, 5
      %v689 = vrot.slane %v403, 6
      %v690 = vrot.slane %v403, 7
      %v691 = vsel %vm683, 1, 0
      %vm692 = vcmp.eq.s32.totalorder %v691, 1
      %v693 = vperm.slane %v403, 0
      %v694 = vperm.slane %v684, 0
      %v695 = vperm.slane %v685, 0
      %v696 = vperm.slane %v686, 0
      %v697 = vperm.slane %v687, 0
      %v698 = vperm.slane %v688, 0
      %v699 = vperm.slane %v689, 0
      %v700 = vperm.slane %v690, 0
      %v709 = vsel %vm692, %v693, %v675
      %v710 = vsel %vm692, %v694, %v676
      %v711 = vsel %vm692, %v695, %v677
      %v712 = vsel %vm692, %v696, %v678
      %v713 = vsel %vm692, %v697, %v679
      %v714 = vsel %vm692, %v698, %v680
      %v715 = vsel %vm692, %v699, %v681
      %v716 = vsel %vm692, %v700, %v682
      %s717 = scalar_lea.vmem [#allocation3], %s453
      %718 = vst.msk [vmem:[%s717] sm:$0xff] %vm59, %v709
      %719 = vst.msk [vmem:[%s717 + $0x10] sm:$0xff] %vm59, %v710
      %720 = vst.msk [vmem:[%s717 + $0x20] sm:$0xff] %vm59, %v711
      %721 = vst.msk [vmem:[%s717 + $0x30] sm:$0xff] %vm59, %v712
      %722 = vst.msk [vmem:[%s717 + $0x40] sm:$0xff] %vm59, %v713
      %723 = vst.msk [vmem:[%s717 + $0x50] sm:$0xff] %vm59, %v714
      %724 = vst.msk [vmem:[%s717 + $0x60] sm:$0xff] %vm59, %v715
      %725 = vst.msk [vmem:[%s717 + $0x70] sm:$0xff] %vm59, %v716
    $region34: #{tpu_custom_call.1} parent=1 // loop_footer
      %s57 = sadd.s32 1, %s53
    $region35: #{tpu_custom_call.1} parent=1 // loop_footer_branch
      %52 = sbr.rel target = $region31
    $region36: #{tpu_custom_call.1} parent=1 // loop_exit
      _
    %vm726 = vcmask 261120
    %727 = vst.msk [vmem:[#allocation2] sm:$0xff] %vm726, %v58
    %v728 = vld [vmem:[#allocation3] sm:$0xff]
    %v729 = vld [vmem:[#allocation3 + $0x8] sm:$0xff]
    %v730 = vld [vmem:[#allocation3 + $0x10] sm:$0xff]
    %v731 = vld [vmem:[#allocation3 + $0x18] sm:$0xff]
    %v732 = vld [vmem:[#allocation3 + $0x20] sm:$0xff]
    %v733 = vld [vmem:[#allocation3 + $0x28] sm:$0xff]
    %v734 = vld [vmem:[#allocation3 + $0x30] sm:$0xff]
    %v735 = vld [vmem:[#allocation3 + $0x38] sm:$0xff]
    %v736 = vld [vmem:[#allocation3 + $0x40] sm:$0xff]
    %v737 = vld [vmem:[#allocation3 + $0x48] sm:$0xff]
    %v738 = vld [vmem:[#allocation3 + $0x50] sm:$0xff]
    %v739 = vld [vmem:[#allocation3 + $0x58] sm:$0xff]
    %v740 = vld [vmem:[#allocation3 + $0x60] sm:$0xff]
    %v741 = vld [vmem:[#allocation3 + $0x68] sm:$0xff]
    %v742 = vld [vmem:[#allocation3 + $0x70] sm:$0xff]
    %v743 = vld [vmem:[#allocation3 + $0x78] sm:$0xff]
    %vm744 = vcmask 130048
    %745 = vst.msk [vmem:[#allocation4] sm:$0xff] %vm744, %v728
    %746 = vst.msk [vmem:[#allocation4 + $0x8] sm:$0xff] %vm744, %v729
    %747 = vst.msk [vmem:[#allocation4 + $0x10] sm:$0xff] %vm744, %v730
    %748 = vst.msk [vmem:[#allocation4 + $0x18] sm:$0xff] %vm744, %v731
    %749 = vst.msk [vmem:[#allocation4 + $0x20] sm:$0xff] %vm744, %v732
    %750 = vst.msk [vmem:[#allocation4 + $0x28] sm:$0xff] %vm744, %v733
    %751 = vst.msk [vmem:[#allocation4 + $0x30] sm:$0xff] %vm744, %v734
    %752 = vst.msk [vmem:[#allocation4 + $0x38] sm:$0xff] %vm744, %v735
    %753 = vst.msk [vmem:[#allocation4 + $0x40] sm:$0xff] %vm744, %v736
    %754 = vst.msk [vmem:[#allocation4 + $0x48] sm:$0xff] %vm744, %v737
    %755 = vst.msk [vmem:[#allocation4 + $0x50] sm:$0xff] %vm744, %v738
    %756 = vst.msk [vmem:[#allocation4 + $0x58] sm:$0xff] %vm744, %v739
    %757 = vst.msk [vmem:[#allocation4 + $0x60] sm:$0xff] %vm744, %v740
    %758 = vst.msk [vmem:[#allocation4 + $0x68] sm:$0xff] %vm744, %v741
    %759 = vst.msk [vmem:[#allocation4 + $0x70] sm:$0xff] %vm744, %v742
    %760 = vst.msk [vmem:[#allocation4 + $0x78] sm:$0xff] %vm744, %v743
    %v761 = vld [vmem:[%s5] sm:$0xff]
    %v762 = vld [vmem:[%s5 + $0x8] sm:$0xff]
    %v763 = vld [vmem:[%s5 + $0x10] sm:$0xff]
    %v764 = vld [vmem:[%s5 + $0x18] sm:$0xff]
    %v766 = vsel %vm726, %v728, 0
    %v769 = vsel %vm726, %v729, 0
    %v772 = vsel %vm726, %v730, 0
    %v775 = vsel %vm726, %v731, 0
    %v778 = vsel %vm726, %v732, 0
    %v781 = vsel %vm726, %v733, 0
    %v784 = vsel %vm726, %v734, 0
    %v787 = vsel %vm726, %v735, 0
    %v790 = vsel %vm726, %v736, 0
    %v793 = vsel %vm726, %v737, 0
    %v796 = vsel %vm726, %v738, 0
    %v799 = vsel %vm726, %v739, 0
    %v802 = vsel %vm726, %v740, 0
    %v805 = vsel %vm726, %v741, 0
    %v808 = vsel %vm726, %v742, 0
    %v811 = vsel %vm726, %v743, 0
    %813 = vmatpush.msra.mxu0 0.0
    %814 = vmatpush.msra.mxu0 0.0
    %815 = vmatpush.msra.mxu0 0.0
    %816 = vmatpush.msra.mxu0 0.0
    %817 = vmatpush.msra.mxu0 0.0
    %818 = vmatpush.msra.mxu0 0.0
    %819 = vmatpush.msra.mxu0 0.0
    %820 = vmatpush.msra.mxu0 0.0
    %821 = vmatpush.msra.mxu0 0.0
    %822 = vmatpush.msra.mxu0 0.0
    %823 = vmatpush.msra.mxu0 0.0
    %824 = vmatpush.msra.mxu0 0.0
    %825 = vmatpush.msra.mxu0 %v764
    %826 = vmatpush.msra.mxu0 %v763
    %827 = vmatpush.msra.mxu0 %v762
    %828 = vmatpush.msra.mxu0 %v761
    %829 = vmatmul.f32.gmra.mxu0 %v766
    %v830 = vpop.f32.mrf.mxu0
    %v831 = vadd.f32 0.0, %v830
    %832 = vmatmul.f32.gmra.mxu0 %v769
    %v833 = vpop.f32.mrf.mxu0
    %v834 = vadd.f32 0.0, %v833
    %835 = vmatmul.f32.gmra.mxu0 %v772
    %v836 = vpop.f32.mrf.mxu0
    %v837 = vadd.f32 0.0, %v836
    %838 = vmatmul.f32.gmra.mxu0 %v775
    %v839 = vpop.f32.mrf.mxu0
    %v840 = vadd.f32 0.0, %v839
    %841 = vmatmul.f32.gmra.mxu0 %v778
    %v842 = vpop.f32.mrf.mxu0
    %v843 = vadd.f32 0.0, %v842
    %844 = vmatmul.f32.gmra.mxu0 %v781
    %v845 = vpop.f32.mrf.mxu0
    %v846 = vadd.f32 0.0, %v845
    %847 = vmatmul.f32.gmra.mxu0 %v784
    %v848 = vpop.f32.mrf.mxu0
    %v849 = vadd.f32 0.0, %v848
    %850 = vmatmul.f32.gmra.mxu0 %v787
    %v851 = vpop.f32.mrf.mxu0
    %v852 = vadd.f32 0.0, %v851
    %853 = vmatmul.f32.gmra.mxu0 %v790
    %v854 = vpop.f32.mrf.mxu0
    %v855 = vadd.f32 0.0, %v854
    %856 = vmatmul.f32.gmra.mxu0 %v793
    %v857 = vpop.f32.mrf.mxu0
    %v858 = vadd.f32 0.0, %v857
    %859 = vmatmul.f32.gmra.mxu0 %v796
    %v860 = vpop.f32.mrf.mxu0
    %v861 = vadd.f32 0.0, %v860
    %862 = vmatmul.f32.gmra.mxu0 %v799
    %v863 = vpop.f32.mrf.mxu0
    %v864 = vadd.f32 0.0, %v863
    %865 = vmatmul.f32.gmra.mxu0 %v802
    %v866 = vpop.f32.mrf.mxu0
    %v867 = vadd.f32 0.0, %v866
    %868 = vmatmul.f32.gmra.mxu0 %v805
    %v869 = vpop.f32.mrf.mxu0
    %v870 = vadd.f32 0.0, %v869
    %871 = vmatmul.f32.gmra.mxu0 %v808
    %v872 = vpop.f32.mrf.mxu0
    %v873 = vadd.f32 0.0, %v872
    %874 = vmatmul.f32.gmra.mxu0 %v811
    %v875 = vpop.f32.mrf.mxu0
    %v876 = vadd.f32 0.0, %v875
    %877 = vdwg.mxu0
    %878 = vxpose.xlu0.b32.start [1/16] %v831, 128
    %879 = vxpose.xlu0.b32.cont [2/16] %v834, 128
    %880 = vxpose.xlu0.b32.cont [3/16] 0.0, 128
    %881 = vxpose.xlu0.b32.cont [4/16] 0.0, 128
    %882 = vxpose.xlu0.b32.cont [5/16] 0.0, 128
    %883 = vxpose.xlu0.b32.cont [6/16] 0.0, 128
    %884 = vxpose.xlu0.b32.cont [7/16] 0.0, 128
    %885 = vxpose.xlu0.b32.cont [8/16] 0.0, 128
    %886 = vxpose.xlu0.b32.cont [9/16] 0.0, 128
    %887 = vxpose.xlu0.b32.cont [10/16] 0.0, 128
    %888 = vxpose.xlu0.b32.cont [11/16] 0.0, 128
    %889 = vxpose.xlu0.b32.cont [12/16] 0.0, 128
    %890 = vxpose.xlu0.b32.cont [13/16] 0.0, 128
    %891 = vxpose.xlu0.b32.cont [14/16] 0.0, 128
    %892 = vxpose.xlu0.b32.cont [15/16] 0.0, 128
    %893 = vxpose.xlu0.b32.end [16/16] 0.0, 128
    %v894 = vpop.trf.xlu0
    %v895 = vpop.trf.xlu0
    %v896 = vpop.trf.xlu0
    %v897 = vpop.trf.xlu0
    %v898 = vpop.trf.xlu0
    %v899 = vpop.trf.xlu0
    %v900 = vpop.trf.xlu0
    %v901 = vpop.trf.xlu0
    %v902 = vpop.trf.xlu0
    %v903 = vpop.trf.xlu0
    %v904 = vpop.trf.xlu0
    %v905 = vpop.trf.xlu0
    %v906 = vpop.trf.xlu0
    %v907 = vpop.trf.xlu0
    %v908 = vpop.trf.xlu0
    %v909 = vpop.trf.xlu0
    %910 = vst.msk [vmem:[#allocation6] sm:$0xff] %vm744, %v894
    %911 = vxpose.xlu0.b32.start [1/16] %v837, 128
    %912 = vxpose.xlu0.b32.cont [2/16] %v840, 128
    %913 = vxpose.xlu0.b32.cont [3/16] 0.0, 128
    %914 = vxpose.xlu0.b32.cont [4/16] 0.0, 128
    %915 = vxpose.xlu0.b32.cont [5/16] 0.0, 128
    %916 = vxpose.xlu0.b32.cont [6/16] 0.0, 128
    %917 = vxpose.xlu0.b32.cont [7/16] 0.0, 128
    %918 = vxpose.xlu0.b32.cont [8/16] 0.0, 128
    %919 = vxpose.xlu0.b32.cont [9/16] 0.0, 128
    %920 = vxpose.xlu0.b32.cont [10/16] 0.0, 128
    %921 = vxpose.xlu0.b32.cont [11/16] 0.0, 128
    %922 = vxpose.xlu0.b32.cont [12/16] 0.0, 128
    %923 = vxpose.xlu0.b32.cont [13/16] 0.0, 128
    %924 = vxpose.xlu0.b32.cont [14/16] 0.0, 128
    %925 = vxpose.xlu0.b32.cont [15/16] 0.0, 128
    %926 = vxpose.xlu0.b32.end [16/16] 0.0, 128
    %v927 = vpop.trf.xlu0
    %v928 = vpop.trf.xlu0
    %v929 = vpop.trf.xlu0
    %v930 = vpop.trf.xlu0
    %v931 = vpop.trf.xlu0
    %v932 = vpop.trf.xlu0
    %v933 = vpop.trf.xlu0
    %v934 = vpop.trf.xlu0
    %v935 = vpop.trf.xlu0
    %v936 = vpop.trf.xlu0
    %v937 = vpop.trf.xlu0
    %v938 = vpop.trf.xlu0
    %v939 = vpop.trf.xlu0
    %v940 = vpop.trf.xlu0
    %v941 = vpop.trf.xlu0
    %v942 = vpop.trf.xlu0
    %s943 = scalar_lea.vmem [#allocation6], 8
    %944 = vst.msk [vmem:[%s943] sm:$0xff] %vm744, %v927
    %945 = vxpose.xlu0.b32.start [1/16] %v843, 128
    %946 = vxpose.xlu0.b32.cont [2/16] %v846, 128
    %947 = vxpose.xlu0.b32.cont [3/16] 0.0, 128
    %948 = vxpose.xlu0.b32.cont [4/16] 0.0, 128
    %949 = vxpose.xlu0.b32.cont [5/16] 0.0, 128
    %950 = vxpose.xlu0.b32.cont [6/16] 0.0, 128
    %951 = vxpose.xlu0.b32.cont [7/16] 0.0, 128
    %952 = vxpose.xlu0.b32.cont [8/16] 0.0, 128
    %953 = vxpose.xlu0.b32.cont [9/16] 0.0, 128
    %954 = vxpose.xlu0.b32.cont [10/16] 0.0, 128
    %955 = vxpose.xlu0.b32.cont [11/16] 0.0, 128
    %956 = vxpose.xlu0.b32.cont [12/16] 0.0, 128
    %957 = vxpose.xlu0.b32.cont [13/16] 0.0, 128
    %958 = vxpose.xlu0.b32.cont [14/16] 0.0, 128
    %959 = vxpose.xlu0.b32.cont [15/16] 0.0, 128
    %960 = vxpose.xlu0.b32.end [16/16] 0.0, 128
    %v961 = vpop.trf.xlu0
    %v962 = vpop.trf.xlu0
    %v963 = vpop.trf.xlu0
    %v964 = vpop.trf.xlu0
    %v965 = vpop.trf.xlu0
    %v966 = vpop.trf.xlu0
    %v967 = vpop.trf.xlu0
    %v968 = vpop.trf.xlu0
    %v969 = vpop.trf.xlu0
    %v970 = vpop.trf.xlu0
    %v971 = vpop.trf.xlu0
    %v972 = vpop.trf.xlu0
    %v973 = vpop.trf.xlu0
    %v974 = vpop.trf.xlu0
    %v975 = vpop.trf.xlu0
    %v976 = vpop.trf.xlu0
    %s977 = scalar_lea.vmem [#allocation6], 16
    %978 = vst.msk [vmem:[%s977] sm:$0xff] %vm744, %v961
    %979 = vxpose.xlu0.b32.start [1/16] %v849, 128
    %980 = vxpose.xlu0.b32.cont [2/16] %v852, 128
    %981 = vxpose.xlu0.b32.cont [3/16] 0.0, 128
    %982 = vxpose.xlu0.b32.cont [4/16] 0.0, 128
    %983 = vxpose.xlu0.b32.cont [5/16] 0.0, 128
    %984 = vxpose.xlu0.b32.cont [6/16] 0.0, 128
    %985 = vxpose.xlu0.b32.cont [7/16] 0.0, 128
    %986 = vxpose.xlu0.b32.cont [8/16] 0.0, 128
    %987 = vxpose.xlu0.b32.cont [9/16] 0.0, 128
    %988 = vxpose.xlu0.b32.cont [10/16] 0.0, 128
    %989 = vxpose.xlu0.b32.cont [11/16] 0.0, 128
    %990 = vxpose.xlu0.b32.cont [12/16] 0.0, 128
    %991 = vxpose.xlu0.b32.cont [13/16] 0.0, 128
    %992 = vxpose.xlu0.b32.cont [14/16] 0.0, 128
    %993 = vxpose.xlu0.b32.cont [15/16] 0.0, 128
    %994 = vxpose.xlu0.b32.end [16/16] 0.0, 128
    %v995 = vpop.trf.xlu0
    %v996 = vpop.trf.xlu0
    %v997 = vpop.trf.xlu0
    %v998 = vpop.trf.xlu0
    %v999 = vpop.trf.xlu0
    %v1000 = vpop.trf.xlu0
    %v1001 = vpop.trf.xlu0
    %v1002 = vpop.trf.xlu0
    %v1003 = vpop.trf.xlu0
    %v1004 = vpop.trf.xlu0
    %v1005 = vpop.trf.xlu0
    %v1006 = vpop.trf.xlu0
    %v1007 = vpop.trf.xlu0
    %v1008 = vpop.trf.xlu0
    %v1009 = vpop.trf.xlu0
    %v1010 = vpop.trf.xlu0
    %s1011 = scalar_lea.vmem [#allocation6], 24
    %1012 = vst.msk [vmem:[%s1011] sm:$0xff] %vm744, %v995
    %1013 = vxpose.xlu0.b32.start [1/16] %v855, 128
    %1014 = vxpose.xlu0.b32.cont [2/16] %v858, 128
    %1015 = vxpose.xlu0.b32.cont [3/16] 0.0, 128
    %1016 = vxpose.xlu0.b32.cont [4/16] 0.0, 128
    %1017 = vxpose.xlu0.b32.cont [5/16] 0.0, 128
    %1018 = vxpose.xlu0.b32.cont [6/16] 0.0, 128
    %1019 = vxpose.xlu0.b32.cont [7/16] 0.0, 128
    %1020 = vxpose.xlu0.b32.cont [8/16] 0.0, 128
    %1021 = vxpose.xlu0.b32.cont [9/16] 0.0, 128
    %1022 = vxpose.xlu0.b32.cont [10/16] 0.0, 128
    %1023 = vxpose.xlu0.b32.cont [11/16] 0.0, 128
    %1024 = vxpose.xlu0.b32.cont [12/16] 0.0, 128
    %1025 = vxpose.xlu0.b32.cont [13/16] 0.0, 128
    %1026 = vxpose.xlu0.b32.cont [14/16] 0.0, 128
    %1027 = vxpose.xlu0.b32.cont [15/16] 0.0, 128
    %1028 = vxpose.xlu0.b32.end [16/16] 0.0, 128
    %v1029 = vpop.trf.xlu0
    %v1030 = vpop.trf.xlu0
    %v1031 = vpop.trf.xlu0
    %v1032 = vpop.trf.xlu0
    %v1033 = vpop.trf.xlu0
    %v1034 = vpop.trf.xlu0
    %v1035 = vpop.trf.xlu0
    %v1036 = vpop.trf.xlu0
    %v1037 = vpop.trf.xlu0
    %v1038 = vpop.trf.xlu0
    %v1039 = vpop.trf.xlu0
    %v1040 = vpop.trf.xlu0
    %v1041 = vpop.trf.xlu0
    %v1042 = vpop.trf.xlu0
    %v1043 = vpop.trf.xlu0
    %v1044 = vpop.trf.xlu0
    %s1045 = scalar_lea.vmem [#allocation6], 32
    %1046 = vst.msk [vmem:[%s1045] sm:$0xff] %vm744, %v1029
    %1047 = vxpose.xlu0.b32.start [1/16] %v861, 128
    %1048 = vxpose.xlu0.b32.cont [2/16] %v864, 128
    %1049 = vxpose.xlu0.b32.cont [3/16] 0.0, 128
    %1050 = vxpose.xlu0.b32.cont [4/16] 0.0, 128
    %1051 = vxpose.xlu0.b32.cont [5/16] 0.0, 128
    %1052 = vxpose.xlu0.b32.cont [6/16] 0.0, 128
    %1053 = vxpose.xlu0.b32.cont [7/16] 0.0, 128
    %1054 = vxpose.xlu0.b32.cont [8/16] 0.0, 128
    %1055 = vxpose.xlu0.b32.cont [9/16] 0.0, 128
    %1056 = vxpose.xlu0.b32.cont [10/16] 0.0, 128
    %1057 = vxpose.xlu0.b32.cont [11/16] 0.0, 128
    %1058 = vxpose.xlu0.b32.cont [12/16] 0.0, 128
    %1059 = vxpose.xlu0.b32.cont [13/16] 0.0, 128
    %1060 = vxpose.xlu0.b32.cont [14/16] 0.0, 128
    %1061 = vxpose.xlu0.b32.cont [15/16] 0.0, 128
    %1062 = vxpose.xlu0.b32.end [16/16] 0.0, 128
    %v1063 = vpop.trf.xlu0
    %v1064 = vpop.trf.xlu0
    %v1065 = vpop.trf.xlu0
    %v1066 = vpop.trf.xlu0
    %v1067 = vpop.trf.xlu0
    %v1068 = vpop.trf.xlu0
    %v1069 = vpop.trf.xlu0
    %v1070 = vpop.trf.xlu0
    %v1071 = vpop.trf.xlu0
    %v1072 = vpop.trf.xlu0
    %v1073 = vpop.trf.xlu0
    %v1074 = vpop.trf.xlu0
    %v1075 = vpop.trf.xlu0
    %v1076 = vpop.trf.xlu0
    %v1077 = vpop.trf.xlu0
    %v1078 = vpop.trf.xlu0
    %s1079 = scalar_lea.vmem [#allocation6], 40
    %1080 = vst.msk [vmem:[%s1079] sm:$0xff] %vm744, %v1063
    %1081 = vxpose.xlu0.b32.start [1/16] %v867, 128
    %1082 = vxpose.xlu0.b32.cont [2/16] %v870, 128
    %1083 = vxpose.xlu0.b32.cont [3/16] 0.0, 128
    %1084 = vxpose.xlu0.b32.cont [4/16] 0.0, 128
    %1085 = vxpose.xlu0.b32.cont [5/16] 0.0, 128
    %1086 = vxpose.xlu0.b32.cont [6/16] 0.0, 128
    %1087 = vxpose.xlu0.b32.cont [7/16] 0.0, 128
    %1088 = vxpose.xlu0.b32.cont [8/16] 0.0, 128
    %1089 = vxpose.xlu0.b32.cont [9/16] 0.0, 128
    %1090 = vxpose.xlu0.b32.cont [10/16] 0.0, 128
    %1091 = vxpose.xlu0.b32.cont [11/16] 0.0, 128
    %1092 = vxpose.xlu0.b32.cont [12/16] 0.0, 128
    %1093 = vxpose.xlu0.b32.cont [13/16] 0.0, 128
    %1094 = vxpose.xlu0.b32.cont [14/16] 0.0, 128
    %1095 = vxpose.xlu0.b32.cont [15/16] 0.0, 128
    %1096 = vxpose.xlu0.b32.end [16/16] 0.0, 128
    %v1097 = vpop.trf.xlu0
    %v1098 = vpop.trf.xlu0
    %v1099 = vpop.trf.xlu0
    %v1100 = vpop.trf.xlu0
    %v1101 = vpop.trf.xlu0
    %v1102 = vpop.trf.xlu0
    %v1103 = vpop.trf.xlu0
    %v1104 = vpop.trf.xlu0
    %v1105 = vpop.trf.xlu0
    %v1106 = vpop.trf.xlu0
    %v1107 = vpop.trf.xlu0
    %v1108 = vpop.trf.xlu0
    %v1109 = vpop.trf.xlu0
    %v1110 = vpop.trf.xlu0
    %v1111 = vpop.trf.xlu0
    %v1112 = vpop.trf.xlu0
    %s1113 = scalar_lea.vmem [#allocation6], 48
    %1114 = vst.msk [vmem:[%s1113] sm:$0xff] %vm744, %v1097
    %1115 = vxpose.xlu0.b32.start [1/16] %v873, 128
    %1116 = vxpose.xlu0.b32.cont [2/16] %v876, 128
    %1117 = vxpose.xlu0.b32.cont [3/16] 0.0, 128
    %1118 = vxpose.xlu0.b32.cont [4/16] 0.0, 128
    %1119 = vxpose.xlu0.b32.cont [5/16] 0.0, 128
    %1120 = vxpose.xlu0.b32.cont [6/16] 0.0, 128
    %1121 = vxpose.xlu0.b32.cont [7/16] 0.0, 128
    %1122 = vxpose.xlu0.b32.cont [8/16] 0.0, 128
    %1123 = vxpose.xlu0.b32.cont [9/16] 0.0, 128
    %1124 = vxpose.xlu0.b32.cont [10/16] 0.0, 128
    %1125 = vxpose.xlu0.b32.cont [11/16] 0.0, 128
    %1126 = vxpose.xlu0.b32.cont [12/16] 0.0, 128
    %1127 = vxpose.xlu0.b32.cont [13/16] 0.0, 128
    %1128 = vxpose.xlu0.b32.cont [14/16] 0.0, 128
    %1129 = vxpose.xlu0.b32.cont [15/16] 0.0, 128
    %1130 = vxpose.xlu0.b32.end [16/16] 0.0, 128
    %v1131 = vpop.trf.xlu0
    %v1132 = vpop.trf.xlu0
    %v1133 = vpop.trf.xlu0
    %v1134 = vpop.trf.xlu0
    %v1135 = vpop.trf.xlu0
    %v1136 = vpop.trf.xlu0
    %v1137 = vpop.trf.xlu0
    %v1138 = vpop.trf.xlu0
    %v1139 = vpop.trf.xlu0
    %v1140 = vpop.trf.xlu0
    %v1141 = vpop.trf.xlu0
    %v1142 = vpop.trf.xlu0
    %v1143 = vpop.trf.xlu0
    %v1144 = vpop.trf.xlu0
    %v1145 = vpop.trf.xlu0
    %v1146 = vpop.trf.xlu0
    %s1147 = scalar_lea.vmem [#allocation6], 56
    %1148 = vst.msk [vmem:[%s1147] sm:$0xff] %vm744, %v1131
    // Predicated region
    $region37: #{tpu_custom_call.1} parent=1 // pred_check
      _
    $region38: #{tpu_custom_call.1} parent=1 // pred_check_branch
      %1150 = sbr.rel (0) target = $region40
    $region39: #{tpu_custom_call.1} parent=1 // pred_region
      %1152 = vsyncadd [#allocation5], 0
      %s1153 = sshll.u32 [#allocation4], 4
      %s1154 = int_to_ptr.vmem [resolvable:$true] %s1153
      %s1155 = sshll.u32 %s6, 4
      %s1156 = int_to_ptr.hbm [resolvable:$true] %s1155
      %1161 = dma.vmem_to_hbm [thread:$0]  %s1154, 2048, %s1156, [#allocation5], 128, 128, 8
    $region40: #{tpu_custom_call.1} parent=1 // pred_fallthru
      _
    // Predicated region
    $region41: #{tpu_custom_call.1} parent=1 // pred_check
      _
    $region42: #{tpu_custom_call.1} parent=1 // pred_check_branch
      %1163 = sbr.rel (0) target = $region44
    $region43: #{tpu_custom_call.1} parent=1 // pred_region
      %1165 = vsyncadd [#allocation7], 0
      %s1166 = sshll.u32 [#allocation6], 4
      %s1167 = int_to_ptr.vmem [resolvable:$true] %s1166
      %s1168 = sshll.u32 %s7, 4
      %s1169 = int_to_ptr.hbm [resolvable:$true] %s1168
      %1174 = dma.vmem_to_hbm [thread:$0]  %s1167, 1024, %s1169, [#allocation7], 128, 128, 8
    $region44: #{tpu_custom_call.1} parent=1 // pred_fallthru
      _
    // Predicated region
    $region45: #{tpu_custom_call.1} parent=1 // pred_check
      _
    $region46: #{tpu_custom_call.1} parent=1 // pred_check_branch
      %1176 = sbr.rel (0) target = $region48
    $region47: #{tpu_custom_call.1} parent=1 // pred_region
      %1178 = dma.done [#allocation5], 2048
    $region48: #{tpu_custom_call.1} parent=1 // pred_fallthru
      _
    // Predicated region
    $region49: #{tpu_custom_call.1} parent=1 // pred_check
      _
    $region50: #{tpu_custom_call.1} parent=1 // pred_check_branch
      %1180 = sbr.rel (0) target = $region52
    $region51: #{tpu_custom_call.1} parent=1 // pred_region
      %1182 = dma.done [#allocation7], 1024
    $region52: #{tpu_custom_call.1} parent=1 // pred_fallthru
      _
    %1183 = vsyncpa [#allocation5], 1
    %1184 = vsyncpa [#allocation7], 1

</llo_original>
